<compile_context>
chip_gen: v5e
topology: v5e:2x2
jax: 0.10.0
libtpu: 0.0.40
codegen_flags: <defaults>
</compile_context>

<pallas_src>
import functools

import jax
import jax.numpy as jnp
from jax.experimental import pallas as pl
from jax.experimental.pallas import tpu as pltpu


def _cross_attn_kernel(x_ref, enc_ref, wq_ref, wk_ref, wv_ref, wo_ref, bo_ref,
                       out_ref, *, heads, dim_head, scale):
    # x_ref:  (Bb, Sq, Dq)        enc_ref: (Bb, Skv, Dc)
    # wq_ref: (Dq, inner)         wk_ref/wv_ref: (Dc, inner)
    # wo_ref: (inner, Dq)         bo_ref: (1, Dq) f32
    Bb, Sq, Dq = x_ref.shape
    _, Skv, Dc = enc_ref.shape
    inner = heads * dim_head
    cdt = wq_ref.dtype  # MXU input dtype (bf16 by default), accumulation is f32

    # Fold batch into the matmul M dimension: one big projection per tensor.
    x = x_ref[...].reshape(Bb * Sq, Dq).astype(cdt)
    enc = enc_ref[...].reshape(Bb * Skv, Dc).astype(cdt)

    q = jnp.dot(x, wq_ref[...], preferred_element_type=jnp.float32)    # (Bb*Sq, inner)
    k = jnp.dot(enc, wk_ref[...], preferred_element_type=jnp.float32)  # (Bb*Skv, inner)
    v = jnp.dot(enc, wv_ref[...], preferred_element_type=jnp.float32)  # (Bb*Skv, inner)

    # Fold the attention scale into q once (instead of scaling each score tile).
    q = q * scale

    # Split heads once; (batch*heads) becomes the batch dim of the contractions.
    def split_heads(t, s):
        t = t.reshape(Bb, s, heads, dim_head).transpose(0, 2, 1, 3)
        return t.reshape(Bb * heads, s, dim_head).astype(cdt)

    qh = split_heads(q, Sq)    # (Bb*heads, Sq,  dh)
    kh = split_heads(k, Skv)   # (Bb*heads, Skv, dh)
    vh = split_heads(v, Skv)   # (Bb*heads, Skv, dh)

    # Scores: contract dim_head directly (no explicit k transpose).
    scores = jnp.einsum("hqd,hkd->hqk", qh, kh,
                        preferred_element_type=jnp.float32)  # (Bb*heads, Sq, Skv) f32

    # Numerically-stable softmax in f32; divide via EUP reciprocal.
    m = jnp.max(scores, axis=-1, keepdims=True)
    e = jnp.exp(scores - m)
    denom = jnp.sum(e, axis=-1, keepdims=True)
    probs = e * pl.reciprocal(denom, approx=True)

    attn = jnp.einsum("hqk,hkd->hqd", probs.astype(cdt), vh,
                      preferred_element_type=jnp.float32)     # (Bb*heads, Sq, dh)

    # Merge heads back to (Bb*Sq, inner) and apply the output projection (+bias).
    attn = attn.reshape(Bb, heads, Sq, dim_head).transpose(0, 2, 1, 3)
    attn = attn.reshape(Bb * Sq, inner)
    out = jnp.dot(attn.astype(cdt), wo_ref[...],
                  preferred_element_type=jnp.float32) + bo_ref[...]
    # Dropout(p=0.0) is identity.
    out_ref[...] = out.reshape(Bb, Sq, Dq).astype(out_ref.dtype)


def _pick_block_b(B, Sq):
    """Largest divisor of B such that block_b*Sq stays near the MXU sweet spot."""
    target = max(1, 256 // max(Sq, 1))
    best = 1
    for bb in range(1, B + 1):
        if B % bb == 0 and bb <= target:
            best = bb
    return best


def cross_attention_pallas(hidden_states, encoder_hidden_states, params, *,
                           heads, dim_head, compute_dtype=jnp.bfloat16,
                           block_b=None):
    """hidden_states: (B, Sq, Dq); encoder_hidden_states: (B, Skv, Dc) or None."""
    if encoder_hidden_states is None:
        encoder_hidden_states = hidden_states  # self-attention path of the module

    B, Sq, Dq = hidden_states.shape
    _, Skv, Dc = encoder_hidden_states.shape
    inner = heads * dim_head
    scale = dim_head ** -0.5

    if block_b is None:
        block_b = _pick_block_b(B, Sq)
    assert B % block_b == 0, "block_b must divide the batch size"

    # Pre-transpose PyTorch-layout weights (out, in) -> (in, out) and cast the
    # MXU inputs to bf16 in the wrapper (halves weight DMA bytes / VMEM).
    wq_t = params["wq"].T.astype(compute_dtype)   # (Dq, inner)
    wk_t = params["wk"].T.astype(compute_dtype)   # (Dc, inner)
    wv_t = params["wv"].T.astype(compute_dtype)   # (Dc, inner)
    wo_t = params["wo"].T.astype(compute_dtype)   # (inner, Dq)
    bo = params["bo"].reshape(1, Dq).astype(jnp.float32)

    kernel = functools.partial(_cross_attn_kernel, heads=heads,
                               dim_head=dim_head, scale=scale)

    return pl.pallas_call(
        kernel,
        out_shape=jax.ShapeDtypeStruct((B, Sq, Dq), hidden_states.dtype),
        grid_spec=pltpu.PrefetchScalarGridSpec(
            num_scalar_prefetch=0,
            grid=(B // block_b,),
            in_specs=[
                pl.BlockSpec((block_b, Sq, Dq), lambda b: (b, 0, 0)),
                pl.BlockSpec((block_b, Skv, Dc), lambda b: (b, 0, 0)),
                pl.BlockSpec((Dq, inner), lambda b: (0, 0)),
                pl.BlockSpec((Dc, inner), lambda b: (0, 0)),
                pl.BlockSpec((Dc, inner), lambda b: (0, 0)),
                pl.BlockSpec((inner, Dq), lambda b: (0, 0)),
                pl.BlockSpec((1, Dq), lambda b: (0, 0)),
            ],
            out_specs=pl.BlockSpec((block_b, Sq, Dq), lambda b: (b, 0, 0)),
        ),
        compiler_params=pltpu.CompilerParams(
            dimension_semantics=("parallel",)),
    )(hidden_states, encoder_hidden_states, wq_t, wk_t, wv_t, wo_t, bo)


def cross_attention_ref(hidden_states, encoder_hidden_states, params, *,
                        heads, dim_head):
    """Pure-JAX f32 reference mirroring CrossAttnProcessor.__call__."""
    B, Sq, Dq = hidden_states.shape
    scale = dim_head ** -0.5
    q = hidden_states @ params["wq"].T                 # (B, Sq, inner)
    k = encoder_hidden_states @ params["wk"].T         # (B, Skv, inner)
    v = encoder_hidden_states @ params["wv"].T

    def split_heads(t):
        b, s, d = t.shape
        return t.reshape(b, s, heads, d // heads).transpose(0, 2, 1, 3)

    qh, kh, vh = split_heads(q), split_heads(k), split_heads(v)
    scores = jnp.einsum("bhqd,bhkd->bhqk", qh, kh) * scale
    probs = jax.nn.softmax(scores, axis=-1)
    attn = jnp.einsum("bhqk,bhkd->bhqd", probs, vh)
    attn = attn.transpose(0, 2, 1, 3).reshape(B, Sq, heads * dim_head)
    return attn @ params["wo"].T + params["bo"]


if __name__ == "__main__":
    # Small shapes consistent with the module's forward.
    B, Sq, Skv = 2, 8, 16
    query_dim = 32
    cross_attention_dim = 16
    heads, dim_head = 4, 8
    inner = heads * dim_head

    key = jax.random.PRNGKey(0)
    k1, k2, k3, k4, k5, k6, k7 = jax.random.split(key, 7)

    hidden_states = jax.random.normal(k1, (B, Sq, query_dim), jnp.float32)
    encoder_hidden_states = jax.random.normal(
        k2, (B, Skv, cross_attention_dim), jnp.float32)

    # Deterministic parameter init (PyTorch Linear weight layout: (out, in)).
    params = {
        "wq": 0.1 * jax.random.normal(k3, (inner, query_dim), jnp.float32),
        "wk": 0.1 * jax.random.normal(k4, (inner, cross_attention_dim), jnp.float32),
        "wv": 0.1 * jax.random.normal(k5, (inner, cross_attention_dim), jnp.float32),
        "wo": 0.1 * jax.random.normal(k6, (query_dim, inner), jnp.float32),
        "bo": 0.01 * jax.random.normal(k7, (query_dim,), jnp.float32),
    }

    out = cross_attention_pallas(hidden_states, encoder_hidden_states, params,
                                 heads=heads, dim_head=dim_head)
    out = jax.block_until_ready(out)

    ref = cross_attention_ref(hidden_states, encoder_hidden_states, params,
                              heads=heads, dim_head=dim_head)
    # Tolerance loosened for bf16 MXU inputs (f32 accumulation, f32 softmax).
    if not jnp.allclose(out, ref, atol=2e-2, rtol=2e-2):
        raise AssertionError("Pallas kernel does not match reference")

    print("KERNEL_OK")
</pallas_src>

<mosaic_0001>
module attributes {stable_mosaic.version = 11 : i64} {
  func.func @_cross_attn_kernel(%arg0: i32, %arg1: memref<2x8x32xf32, #tpu.memory_space<vmem>>, %arg2: memref<2x16x16xf32, #tpu.memory_space<vmem>>, %arg3: memref<32x32xbf16, #tpu.memory_space<vmem>>, %arg4: memref<16x32xbf16, #tpu.memory_space<vmem>>, %arg5: memref<16x32xbf16, #tpu.memory_space<vmem>>, %arg6: memref<32x32xbf16, #tpu.memory_space<vmem>>, %arg7: memref<1x32xf32, #tpu.memory_space<vmem>>, %arg8: memref<2x8x32xf32, #tpu.memory_space<vmem>>) attributes {dimension_semantics = [#tpu.dimension_semantics<parallel>], iteration_bounds = array<i64: 1>, scalar_prefetch = 0 : i64, scratch_operands = 0 : i64, tpu.core_type = #tpu.core_type<tc>, window_params = [{transform_indices = @transform_0, window_bounds = array<i64: 2, 8, 32>}, {transform_indices = @transform_1, window_bounds = array<i64: 2, 16, 16>}, {pipeline_mode = #tpu.pipeline_mode<synchronous>, transform_indices = @transform_2, window_bounds = array<i64: 32, 32>}, {pipeline_mode = #tpu.pipeline_mode<synchronous>, transform_indices = @transform_3, window_bounds = array<i64: 16, 32>}, {pipeline_mode = #tpu.pipeline_mode<synchronous>, transform_indices = @transform_4, window_bounds = array<i64: 16, 32>}, {pipeline_mode = #tpu.pipeline_mode<synchronous>, transform_indices = @transform_5, window_bounds = array<i64: 32, 32>}, {pipeline_mode = #tpu.pipeline_mode<synchronous>, transform_indices = @transform_6, window_bounds = array<i64: 1, 32>}, {transform_indices = @transform_7, window_bounds = array<i64: 2, 8, 32>}]} {
    %c0 = arith.constant 0 : index
    %c0_0 = arith.constant 0 : index
    %c0_1 = arith.constant 0 : index
    %0 = vector.load %arg1[%c0, %c0_0, %c0_1] : memref<2x8x32xf32, #tpu.memory_space<vmem>>, vector<2x8x32xf32>
    %1 = vector.shape_cast %0 : vector<2x8x32xf32> to vector<16x32xf32>
    %2 = arith.truncf %1 : vector<16x32xf32> to vector<16x32xbf16>
    %c0_2 = arith.constant 0 : index
    %c0_3 = arith.constant 0 : index
    %c0_4 = arith.constant 0 : index
    %3 = vector.load %arg2[%c0_2, %c0_3, %c0_4] : memref<2x16x16xf32, #tpu.memory_space<vmem>>, vector<2x16x16xf32>
    %4 = vector.shape_cast %3 : vector<2x16x16xf32> to vector<32x16xf32>
    %5 = arith.truncf %4 : vector<32x16xf32> to vector<32x16xbf16>
    %c0_5 = arith.constant 0 : index
    %c0_6 = arith.constant 0 : index
    %6 = vector.load %arg3[%c0_5, %c0_6] : memref<32x32xbf16, #tpu.memory_space<vmem>>, vector<32x32xbf16>
    %cst = arith.constant dense<0.000000e+00> : vector<16x32xf32>
    %7 = tpu.matmul %2, %6, %cst {dimension_numbers = #tpu.dot_dimension_numbers<[1], [0], [0], [1], [0, 0, 1, 1], [], []>} : vector<16x32xbf16>, vector<32x32xbf16>, vector<16x32xf32> -> vector<16x32xf32>
    %c0_7 = arith.constant 0 : index
    %c0_8 = arith.constant 0 : index
    %8 = vector.load %arg4[%c0_7, %c0_8] : memref<16x32xbf16, #tpu.memory_space<vmem>>, vector<16x32xbf16>
    %cst_9 = arith.constant dense<0.000000e+00> : vector<32x32xf32>
    %9 = tpu.matmul %5, %8, %cst_9 {dimension_numbers = #tpu.dot_dimension_numbers<[1], [0], [0], [1], [0, 0, 1, 1], [], []>} : vector<32x16xbf16>, vector<16x32xbf16>, vector<32x32xf32> -> vector<32x32xf32>
    %c0_10 = arith.constant 0 : index
    %c0_11 = arith.constant 0 : index
    %10 = vector.load %arg5[%c0_10, %c0_11] : memref<16x32xbf16, #tpu.memory_space<vmem>>, vector<16x32xbf16>
    %cst_12 = arith.constant dense<0.000000e+00> : vector<32x32xf32>
    %11 = tpu.matmul %5, %10, %cst_12 {dimension_numbers = #tpu.dot_dimension_numbers<[1], [0], [0], [1], [0, 0, 1, 1], [], []>} : vector<32x16xbf16>, vector<16x32xbf16>, vector<32x32xf32> -> vector<32x32xf32>
    %cst_13 = arith.constant 0.353553385 : f32
    %12 = vector.broadcast %cst_13 : f32 to vector<16x32xf32>
    %13 = arith.mulf %7, %12 : vector<16x32xf32>
    %14 = vector.shape_cast %13 : vector<16x32xf32> to vector<2x8x4x8xf32>
    %15 = tpu.transpose %14, [0, 2, 1, 3] : vector<2x8x4x8xf32> -> vector<2x4x8x8xf32>
    %16 = vector.shape_cast %15 : vector<2x4x8x8xf32> to vector<8x8x8xf32>
    %17 = arith.truncf %16 : vector<8x8x8xf32> to vector<8x8x8xbf16>
    %18 = vector.shape_cast %9 : vector<32x32xf32> to vector<2x16x4x8xf32>
    %19 = tpu.transpose %18, [0, 2, 1, 3] : vector<2x16x4x8xf32> -> vector<2x4x16x8xf32>
    %20 = vector.shape_cast %19 : vector<2x4x16x8xf32> to vector<8x16x8xf32>
    %21 = arith.truncf %20 : vector<8x16x8xf32> to vector<8x16x8xbf16>
    %22 = vector.shape_cast %11 : vector<32x32xf32> to vector<2x16x4x8xf32>
    %23 = tpu.transpose %22, [0, 2, 1, 3] : vector<2x16x4x8xf32> -> vector<2x4x16x8xf32>
    %24 = vector.shape_cast %23 : vector<2x4x16x8xf32> to vector<8x16x8xf32>
    %25 = arith.truncf %24 : vector<8x16x8xf32> to vector<8x16x8xbf16>
    "tpu.trace_start"() <{level = 10 : i32, message = "hqd,hkd->hqk"}> : () -> ()
    %cst_14 = arith.constant dense<0.000000e+00> : vector<8x8x16xf32>
    %26 = tpu.matmul %17, %21, %cst_14 {dimension_numbers = #tpu.dot_dimension_numbers<[2], [2], [1], [1], [0, 0, 0, 1, 1, 1], [0], [0]>} : vector<8x8x8xbf16>, vector<8x16x8xbf16>, vector<8x8x16xf32> -> vector<8x8x16xf32>
    "tpu.trace_stop"() : () -> ()
    %cst_15 = arith.constant dense<0xFF800000> : vector<8x8xf32>
    %27 = vector.multi_reduction <maximumf>, %26, %cst_15 [2] : vector<8x8x16xf32> to vector<8x8xf32>
    %28 = vector.shape_cast %27 : vector<8x8xf32> to vector<8x8x1xf32>
    %29 = vector.broadcast %28 : vector<8x8x1xf32> to vector<8x8x16xf32>
    %30 = arith.subf %26, %29 : vector<8x8x16xf32>
    %31 = math.exp %30 : vector<8x8x16xf32>
    %cst_16 = arith.constant dense<0.000000e+00> : vector<8x8xf32>
    %32 = vector.multi_reduction <add>, %31, %cst_16 [2] : vector<8x8x16xf32> to vector<8x8xf32>
    %33 = vector.shape_cast %32 : vector<8x8xf32> to vector<8x8x1xf32>
    %34 = tpu.reciprocal %33 {approx = true} : vector<8x8x1xf32> -> vector<8x8x1xf32>
    %35 = vector.broadcast %34 : vector<8x8x1xf32> to vector<8x8x16xf32>
    %36 = arith.mulf %31, %35 : vector<8x8x16xf32>
    %37 = arith.truncf %36 : vector<8x8x16xf32> to vector<8x8x16xbf16>
    "tpu.trace_start"() <{level = 10 : i32, message = "hqk,hkd->hqd"}> : () -> ()
    %cst_17 = arith.constant dense<0.000000e+00> : vector<8x8x8xf32>
    %38 = tpu.matmul %37, %25, %cst_17 {dimension_numbers = #tpu.dot_dimension_numbers<[2], [1], [1], [2], [0, 0, 0, 1, 1, 2], [0], [0]>} : vector<8x8x16xbf16>, vector<8x16x8xbf16>, vector<8x8x8xf32> -> vector<8x8x8xf32>
    "tpu.trace_stop"() : () -> ()
    %39 = vector.shape_cast %38 : vector<8x8x8xf32> to vector<2x4x8x8xf32>
    %40 = tpu.transpose %39, [0, 2, 1, 3] : vector<2x4x8x8xf32> -> vector<2x8x4x8xf32>
    %41 = vector.shape_cast %40 : vector<2x8x4x8xf32> to vector<16x32xf32>
    %42 = arith.truncf %41 : vector<16x32xf32> to vector<16x32xbf16>
    %c0_18 = arith.constant 0 : index
    %c0_19 = arith.constant 0 : index
    %43 = vector.load %arg6[%c0_18, %c0_19] : memref<32x32xbf16, #tpu.memory_space<vmem>>, vector<32x32xbf16>
    %cst_20 = arith.constant dense<0.000000e+00> : vector<16x32xf32>
    %44 = tpu.matmul %42, %43, %cst_20 {dimension_numbers = #tpu.dot_dimension_numbers<[1], [0], [0], [1], [0, 0, 1, 1], [], []>} : vector<16x32xbf16>, vector<32x32xbf16>, vector<16x32xf32> -> vector<16x32xf32>
    %c0_21 = arith.constant 0 : index
    %c0_22 = arith.constant 0 : index
    %45 = vector.load %arg7[%c0_21, %c0_22] : memref<1x32xf32, #tpu.memory_space<vmem>>, vector<1x32xf32>
    %46 = vector.broadcast %45 : vector<1x32xf32> to vector<16x32xf32>
    %47 = arith.addf %44, %46 : vector<16x32xf32>
    %48 = vector.shape_cast %47 : vector<16x32xf32> to vector<2x8x32xf32>
    %c0_23 = arith.constant 0 : index
    %c0_24 = arith.constant 0 : index
    %c0_25 = arith.constant 0 : index
    %49 = vector.load %arg8[%c0_23, %c0_24, %c0_25] : memref<2x8x32xf32, #tpu.memory_space<vmem>>, vector<2x8x32xf32>
    tpu.vector_store %arg8[%c0_23, %c0_24, %c0_25], %48 {strides = array<i32>} : memref<2x8x32xf32, #tpu.memory_space<vmem>>, vector<2x8x32xf32>,
    return
  }
  func.func @transform_0(%arg0: i32) -> (i32, i32, i32) {
    %c0_i32 = arith.constant 0 : i32
    %c0_i32_0 = arith.constant 0 : i32
    %c0_i32_1 = arith.constant 0 : i32
    return %arg0, %c0_i32, %c0_i32_0 : i32, i32, i32
  }
  func.func @transform_1(%arg0: i32) -> (i32, i32, i32) {
    %c0_i32 = arith.constant 0 : i32
    %c0_i32_0 = arith.constant 0 : i32
    %c0_i32_1 = arith.constant 0 : i32
    return %arg0, %c0_i32, %c0_i32_0 : i32, i32, i32
  }
  func.func @transform_2(%arg0: i32) -> (i32, i32) {
    %c0_i32 = arith.constant 0 : i32
    %c0_i32_0 = arith.constant 0 : i32
    %c0_i32_1 = arith.constant 0 : i32
    return %c0_i32, %c0_i32_0 : i32, i32
  }
  func.func @transform_3(%arg0: i32) -> (i32, i32) {
    %c0_i32 = arith.constant 0 : i32
    %c0_i32_0 = arith.constant 0 : i32
    %c0_i32_1 = arith.constant 0 : i32
    return %c0_i32, %c0_i32_0 : i32, i32
  }
  func.func @transform_4(%arg0: i32) -> (i32, i32) {
    %c0_i32 = arith.constant 0 : i32
    %c0_i32_0 = arith.constant 0 : i32
    %c0_i32_1 = arith.constant 0 : i32
    return %c0_i32, %c0_i32_0 : i32, i32
  }
  func.func @transform_5(%arg0: i32) -> (i32, i32) {
    %c0_i32 = arith.constant 0 : i32
    %c0_i32_0 = arith.constant 0 : i32
    %c0_i32_1 = arith.constant 0 : i32
    return %c0_i32, %c0_i32_0 : i32, i32
  }
  func.func @transform_6(%arg0: i32) -> (i32, i32) {
    %c0_i32 = arith.constant 0 : i32
    %c0_i32_0 = arith.constant 0 : i32
    %c0_i32_1 = arith.constant 0 : i32
    return %c0_i32, %c0_i32_0 : i32, i32
  }
  func.func @transform_7(%arg0: i32) -> (i32, i32, i32) {
    %c0_i32 = arith.constant 0 : i32
    %c0_i32_0 = arith.constant 0 : i32
    %c0_i32_1 = arith.constant 0 : i32
    return %arg0, %c0_i32, %c0_i32_0 : i32, i32, i32
  }
}

</mosaic_0001>

<llo_original>
// kernel: tpu_custom_call.1
$region0: #{tpu_custom_call.1}
  #allocation0 [shape = 'u32[]', space=smem, size = 0x4, offset = 0x4, fixed_abs, tag = 'smem constant byte address 0x4 - core index']
  #allocation1 [shape = 'u32[72,128]{1,0:T(1,128)}', space=vmem, size = 0x9000, scoped, tag = 'internal scratch']
  %s0 = inlined_call_operand.hbm [shape: f32[2,8,32], index: 0, kind: input, shape index: {}]
  %s1 = inlined_call_operand.hbm [shape: f32[2,16,16], index: 1, kind: input, shape index: {}]
  %s2 = inlined_call_operand.hbm [shape: bf16[32,32], index: 2, kind: input, shape index: {}]
  %s3 = inlined_call_operand.hbm [shape: bf16[16,32], index: 3, kind: input, shape index: {}]
  %s4 = inlined_call_operand.hbm [shape: bf16[16,32], index: 4, kind: input, shape index: {}]
  %s5 = inlined_call_operand.hbm [shape: bf16[32,32], index: 5, kind: input, shape index: {}]
  %s6 = inlined_call_operand.vmem [shape: f32[1,32], index: 6, kind: input, shape index: {}]
  %s7 = inlined_call_operand.hbm [shape: f32[2,8,32], index: 7, kind: output, shape index: {}]
  %s8 = sld [smem:[#allocation0]]
  $region62: #{tpu_custom_call.1} parent=0
    _
  %s10 = ssub.s32 1, %s8
  %s11 = scalar_select 0, %s10, %s8
  $region1: #{tpu_custom_call.1} parent=0
    #allocation2 [shape = 'u8[8192]{0}', space=vmem, size = 0x2000, scoped, tag = 'input window, operand 0, single buffered']
    #allocation3 [shape = 's32[1]{0}', space=sflag, size = 0x4, scoped, tag = 'scoped memory for tpu_custom_call.1']
    #allocation4 [shape = 's32[1]{0}', space=sflag, size = 0x4, scoped, tag = 'scoped memory for tpu_custom_call.1']
    #allocation5 [shape = 'u8[16384]{0}', space=vmem, size = 0x4000, scoped, tag = 'input window, operand 1, single buffered']
    #allocation6 [shape = 's32[1]{0}', space=sflag, size = 0x4, scoped, tag = 'scoped memory for tpu_custom_call.1']
    #allocation7 [shape = 'u8[8192]{0}', space=vmem, size = 0x2000, scoped, tag = 'input window, operand 2, single buffered']
    #allocation8 [shape = 'u8[4096]{0}', space=vmem, size = 0x1000, scoped, tag = 'input window, operand 3, single buffered']
    #allocation9 [shape = 's32[1]{0}', space=sflag, size = 0x4, scoped, tag = 'scoped memory for tpu_custom_call.1']
    #allocation10 [shape = 'u8[4096]{0}', space=vmem, size = 0x1000, scoped, tag = 'input window, operand 4, single buffered']
    #allocation11 [shape = 'u8[8192]{0}', space=vmem, size = 0x2000, scoped, tag = 'input window, operand 5, single buffered']
    #allocation12 [shape = 's32[1]{0}', space=sflag, size = 0x4, scoped, tag = 'scoped memory for tpu_custom_call.1']
    #allocation13 [shape = 'u8[8192]{0}', space=vmem, size = 0x2000, scoped, tag = 'output window, operand 0, single buffered']
    %12 = vsyncpa [#allocation3], 0
    %13 = vsyncpa [#allocation6], 0
    %14 = vsyncpa [#allocation9], 0
    %15 = vsyncpa [#allocation12], 0
    %16 = vsyncpa [#allocation4], 0
    // Predicated region
    $region2: #{tpu_custom_call.1} parent=1 // pred_check
      _
    $region3: #{tpu_custom_call.1} parent=1 // pred_check_branch
      %18 = sbr.rel (0) target = $region5
    $region4: #{tpu_custom_call.1} parent=1 // pred_region
      %20 = vsyncadd [#allocation3], 0
      %s21 = sshll.u32 %s0, 4
      %s22 = int_to_ptr.hbm [resolvable:$true] %s21
      %s23 = sshll.u32 [#allocation2], 4
      %s24 = int_to_ptr.vmem [resolvable:$true] %s23
      %29 = dma.hbm_to_vmem [thread:$0]  %s22, 256, %s24, [#allocation3], 128, 128, 8
    $region5: #{tpu_custom_call.1} parent=1 // pred_fallthru
      _
    // Predicated region
    $region6: #{tpu_custom_call.1} parent=1 // pred_check
      _
    $region7: #{tpu_custom_call.1} parent=1 // pred_check_branch
      %31 = sbr.rel (0) target = $region9
    $region8: #{tpu_custom_call.1} parent=1 // pred_region
      %33 = vsyncadd [#allocation6], 0
      %s34 = sshll.u32 %s1, 4
      %s35 = int_to_ptr.hbm [resolvable:$true] %s34
      %s36 = sshll.u32 [#allocation5], 4
      %s37 = int_to_ptr.vmem [resolvable:$true] %s36
      %42 = dma.hbm_to_vmem [thread:$0]  %s35, 512, %s37, [#allocation6], 128, 128, 8
    $region9: #{tpu_custom_call.1} parent=1 // pred_fallthru
      _
    // Predicated region
    $region10: #{tpu_custom_call.1} parent=1 // pred_check
      _
    $region11: #{tpu_custom_call.1} parent=1 // pred_check_branch
      %44 = sbr.rel (0) target = $region13
    $region12: #{tpu_custom_call.1} parent=1 // pred_region
      %46 = vsyncadd [#allocation6], 0
      %s47 = sshll.u32 %s2, 4
      %s48 = int_to_ptr.hbm [resolvable:$true] %s47
      %s49 = sshll.u32 [#allocation7], 4
      %s50 = int_to_ptr.vmem [resolvable:$true] %s49
      %55 = dma.hbm_to_vmem [thread:$0]  %s48, 256, %s50, [#allocation6], 64, 64, 4
    $region13: #{tpu_custom_call.1} parent=1 // pred_fallthru
      _
    // Predicated region
    $region14: #{tpu_custom_call.1} parent=1 // pred_check
      _
    $region15: #{tpu_custom_call.1} parent=1 // pred_check_branch
      %57 = sbr.rel (0) target = $region17
    $region16: #{tpu_custom_call.1} parent=1 // pred_region
      %59 = vsyncadd [#allocation9], 0
      %s60 = sshll.u32 %s3, 4
      %s61 = int_to_ptr.hbm [resolvable:$true] %s60
      %s62 = sshll.u32 [#allocation8], 4
      %s63 = int_to_ptr.vmem [resolvable:$true] %s62
      %68 = dma.hbm_to_vmem [thread:$0]  %s61, 128, %s63, [#allocation9], 64, 64, 4
    $region17: #{tpu_custom_call.1} parent=1 // pred_fallthru
      _
    // Predicated region
    $region18: #{tpu_custom_call.1} parent=1 // pred_check
      _
    $region19: #{tpu_custom_call.1} parent=1 // pred_check_branch
      %70 = sbr.rel (0) target = $region21
    $region20: #{tpu_custom_call.1} parent=1 // pred_region
      %72 = vsyncadd [#allocation9], 0
      %s73 = sshll.u32 %s4, 4
      %s74 = int_to_ptr.hbm [resolvable:$true] %s73
      %s75 = sshll.u32 [#allocation10], 4
      %s76 = int_to_ptr.vmem [resolvable:$true] %s75
      %81 = dma.hbm_to_vmem [thread:$0]  %s74, 128, %s76, [#allocation9], 64, 64, 4
    $region21: #{tpu_custom_call.1} parent=1 // pred_fallthru
      _
    // Predicated region
    $region22: #{tpu_custom_call.1} parent=1 // pred_check
      _
    $region23: #{tpu_custom_call.1} parent=1 // pred_check_branch
      %83 = sbr.rel (0) target = $region25
    $region24: #{tpu_custom_call.1} parent=1 // pred_region
      %85 = vsyncadd [#allocation12], 0
      %s86 = sshll.u32 %s5, 4
      %s87 = int_to_ptr.hbm [resolvable:$true] %s86
      %s88 = sshll.u32 [#allocation11], 4
      %s89 = int_to_ptr.vmem [resolvable:$true] %s88
      %94 = dma.hbm_to_vmem [thread:$0]  %s87, 256, %s89, [#allocation12], 64, 64, 4
    $region25: #{tpu_custom_call.1} parent=1 // pred_fallthru
      _
    // Predicated region
    $region26: #{tpu_custom_call.1} parent=1 // pred_check
      _
    $region27: #{tpu_custom_call.1} parent=1 // pred_check_branch
      %96 = sbr.rel (0) target = $region29
    $region28: #{tpu_custom_call.1} parent=1 // pred_region
      _
    $region29: #{tpu_custom_call.1} parent=1 // pred_fallthru
      _
    // Predicated region
    $region30: #{tpu_custom_call.1} parent=1 // pred_check
      _
    $region31: #{tpu_custom_call.1} parent=1 // pred_check_branch
      %98 = sbr.rel (0) target = $region33
    $region32: #{tpu_custom_call.1} parent=1 // pred_region
      %100 = dma.done [#allocation3], 256
    $region33: #{tpu_custom_call.1} parent=1 // pred_fallthru
      _
    // Predicated region
    $region34: #{tpu_custom_call.1} parent=1 // pred_check
      _
    $region35: #{tpu_custom_call.1} parent=1 // pred_check_branch
      %102 = sbr.rel (0) target = $region37
    $region36: #{tpu_custom_call.1} parent=1 // pred_region
      %104 = dma.done [#allocation6], 512
    $region37: #{tpu_custom_call.1} parent=1 // pred_fallthru
      _
    // Predicated region
    $region38: #{tpu_custom_call.1} parent=1 // pred_check
      _
    $region39: #{tpu_custom_call.1} parent=1 // pred_check_branch
      %106 = sbr.rel (0) target = $region41
    $region40: #{tpu_custom_call.1} parent=1 // pred_region
      %108 = dma.done [#allocation6], 256
    $region41: #{tpu_custom_call.1} parent=1 // pred_fallthru
      _
    // Predicated region
    $region42: #{tpu_custom_call.1} parent=1 // pred_check
      _
    $region43: #{tpu_custom_call.1} parent=1 // pred_check_branch
      %110 = sbr.rel (0) target = $region45
    $region44: #{tpu_custom_call.1} parent=1 // pred_region
      %112 = dma.done [#allocation9], 128
    $region45: #{tpu_custom_call.1} parent=1 // pred_fallthru
      _
    // Predicated region
    $region46: #{tpu_custom_call.1} parent=1 // pred_check
      _
    $region47: #{tpu_custom_call.1} parent=1 // pred_check_branch
      %114 = sbr.rel (0) target = $region49
    $region48: #{tpu_custom_call.1} parent=1 // pred_region
      %116 = dma.done [#allocation9], 128
    $region49: #{tpu_custom_call.1} parent=1 // pred_fallthru
      _
    // Predicated region
    $region50: #{tpu_custom_call.1} parent=1 // pred_check
      _
    $region51: #{tpu_custom_call.1} parent=1 // pred_check_branch
      %118 = sbr.rel (0) target = $region53
    $region52: #{tpu_custom_call.1} parent=1 // pred_region
      %120 = dma.done [#allocation12], 256
    $region53: #{tpu_custom_call.1} parent=1 // pred_fallthru
      _
    %v122 = vld [vmem:[#allocation2] sm:$0xff]
    %v123 = vld [vmem:[#allocation2 + $0x8] sm:$0xff]
    %v124 = vpack.c.bf16 %v123, %v122
    %v125 = vld [vmem:[#allocation5] sm:$0xff]
    %v126 = vld [vmem:[#allocation5 + $0x8] sm:$0xff]
    %v127 = vld [vmem:[#allocation5 + $0x10] sm:$0xff]
    %v128 = vld [vmem:[#allocation5 + $0x18] sm:$0xff]
    %v129 = vpack.c.bf16 %v126, %v125
    %v130 = vpack.c.bf16 %v128, %v127
    %v131 = vld [vmem:[#allocation7] sm:$0xf]
    %v132 = vld [vmem:[#allocation7 + $0x4] sm:$0xf]
    %v133 = vld [vmem:[#allocation7 + $0x8] sm:$0xf]
    %v134 = vld [vmem:[#allocation7 + $0xc] sm:$0xf]
    %v139 = vunpack.c.l.b16 %v131
    %v140 = vunpack.c.l.b16 %v132
    %v141 = vunpack.c.l.b16 %v133
    %v142 = vunpack.c.l.b16 %v134
    %v143 = vpack.c.b16 %v140, %v139
    %v144 = vpack.c.b16 %v142, %v141
    %vm147 = vcmask 261120
    %v149 = vsel %vm147, %v124, 0
    %151 = vmatpush.bf16.msra.mxu0 0
    %152 = vmatpush.bf16.msra.mxu0 0
    %153 = vmatpush.bf16.msra.mxu0 0
    %154 = vmatpush.bf16.msra.mxu0 0
    %155 = vmatpush.bf16.msra.mxu0 0
    %156 = vmatpush.bf16.msra.mxu0 0
    %157 = vmatpush.bf16.msra.mxu0 %v144
    %158 = vmatpush.bf16.msra.mxu0 %v143
    %159 = vmatmul.bf16.gmra.mxu0 %v149
    %v160 = vpop.f32.mrf.mxu0
    %v161 = vadd.f32 0.0, %v160
    %v162 = vpop.f32.mrf.mxu0
    %v163 = vadd.f32 0.0, %v162
    %164 = vdwg.mxu0
    %v165 = vld [vmem:[#allocation8] sm:$0xf]
    %v166 = vld [vmem:[#allocation8 + $0x4] sm:$0xf]
    %v169 = vunpack.c.l.b16 %v165
    %v170 = vunpack.c.l.b16 %v166
    %v171 = vpack.c.b16 %v170, %v169
    %vm173 = vcmask 130048
    %v175 = vsel %vm173, %v129, 0
    %v178 = vsel %vm173, %v130, 0
    %180 = vmatpush.bf16.msra.mxu0 0
    %181 = vmatpush.bf16.msra.mxu0 0
    %182 = vmatpush.bf16.msra.mxu0 0
    %183 = vmatpush.bf16.msra.mxu0 0
    %184 = vmatpush.bf16.msra.mxu0 0
    %185 = vmatpush.bf16.msra.mxu0 0
    %186 = vmatpush.bf16.msra.mxu0 0
    %187 = vmatpush.bf16.msra.mxu0 %v171
    %188 = vmatmul.bf16.gmra.mxu0 %v175
    %v189 = vpop.f32.mrf.mxu0
    %v190 = vadd.f32 0.0, %v189
    %v191 = vpop.f32.mrf.mxu0
    %v192 = vadd.f32 0.0, %v191
    %193 = vmatmul.bf16.gmra.mxu0 %v178
    %v194 = vpop.f32.mrf.mxu0
    %v195 = vadd.f32 0.0, %v194
    %v196 = vpop.f32.mrf.mxu0
    %v197 = vadd.f32 0.0, %v196
    %198 = vdwg.mxu0
    %v199 = vld [vmem:[#allocation10] sm:$0xf]
    %v200 = vld [vmem:[#allocation10 + $0x4] sm:$0xf]
    %v203 = vunpack.c.l.b16 %v199
    %v204 = vunpack.c.l.b16 %v200
    %v205 = vpack.c.b16 %v204, %v203
    %207 = vmatpush.bf16.msra.mxu0 0
    %208 = vmatpush.bf16.msra.mxu0 0
    %209 = vmatpush.bf16.msra.mxu0 0
    %210 = vmatpush.bf16.msra.mxu0 0
    %211 = vmatpush.bf16.msra.mxu0 0
    %212 = vmatpush.bf16.msra.mxu0 0
    %213 = vmatpush.bf16.msra.mxu0 0
    %214 = vmatpush.bf16.msra.mxu0 %v205
    %215 = vmatmul.bf16.gmra.mxu0 %v175
    %v216 = vpop.f32.mrf.mxu0
    %v217 = vadd.f32 0.0, %v216
    %v218 = vpop.f32.mrf.mxu0
    %v219 = vadd.f32 0.0, %v218
    %220 = vmatmul.bf16.gmra.mxu0 %v178
    %v221 = vpop.f32.mrf.mxu0
    %v222 = vadd.f32 0.0, %v221
    %v223 = vpop.f32.mrf.mxu0
    %v224 = vadd.f32 0.0, %v223
    %225 = vdwg.mxu0
    %v226 = vmul.f32 %v161, 0.35355338
    %v227 = vmul.f32 %v163, 0.35355338
    %230 = vrot.lane.b32.xlu0 %v226, 120
    %v231 = vpop.permute.xlu0 %230
    %232 = vrot.lane.b32.xlu0 %v227, 120
    %v233 = vpop.permute.xlu0 %232
    %236 = vrot.lane.b32.xlu0 %v226, 112
    %v237 = vpop.permute.xlu0 %236
    %238 = vrot.lane.b32.xlu0 %v227, 112
    %v239 = vpop.permute.xlu0 %238
    %242 = vrot.lane.b32.xlu0 %v226, 104
    %v243 = vpop.permute.xlu0 %242
    %244 = vrot.lane.b32.xlu0 %v227, 104
    %v245 = vpop.permute.xlu0 %244
    %v248 = vrot.slane %v237, 4
    %vm249 = vcmask 1047556
    %v250 = vsel %vm249, %v248, %v226
    %v251 = vrot.slane %v226, 4
    %v252 = vsel %vm249, %v237, %v251
    %v254 = vunpack.c.l.s4 1983009808
    %v255 = vunpack.c.0.s8 %v254
    %v256 = vperm.slane %v250, %v255
    %v258 = vunpack.c.l.s4 1983009808
    %v259 = vunpack.c.0.s8 %v258
    %v260 = vperm.slane %v252, %v259
    %v261 = vrot.slane %v243, 4
    %v262 = vsel %vm249, %v261, %v231
    %v263 = vrot.slane %v231, 4
    %v264 = vsel %vm249, %v243, %v263
    %v266 = vunpack.c.l.s4 1983009808
    %v267 = vunpack.c.0.s8 %v266
    %v268 = vperm.slane %v262, %v267
    %v270 = vunpack.c.l.s4 1983009808
    %v271 = vunpack.c.0.s8 %v270
    %v272 = vperm.slane %v264, %v271
    %v273 = vrot.slane %v268, 4
    %v274 = vsel %vm249, %v273, %v256
    %v275 = vrot.slane %v256, 4
    %v276 = vsel %vm249, %v268, %v275
    %v278 = vunpack.c.l.s4 1934713408
    %v279 = vunpack.c.0.s8 %v278
    %v280 = vperm.slane %v274, %v279
    %v282 = vunpack.c.l.s4 1934713408
    %v283 = vunpack.c.0.s8 %v282
    %v284 = vperm.slane %v276, %v283
    %v285 = vrot.slane %v272, 4
    %v286 = vsel %vm249, %v285, %v260
    %v287 = vrot.slane %v260, 4
    %v288 = vsel %vm249, %v272, %v287
    %v290 = vunpack.c.l.s4 1934713408
    %v291 = vunpack.c.0.s8 %v290
    %v292 = vperm.slane %v286, %v291
    %v294 = vunpack.c.l.s4 1934713408
    %v295 = vunpack.c.0.s8 %v294
    %v296 = vperm.slane %v288, %v295
    %v297 = vrot.slane %v280, 4
    %v298 = vsel %vm249, 0.0, %v297
    %v299 = vrot.slane %v284, 4
    %v300 = vsel %vm249, 0.0, %v299
    %v301 = vrot.slane %v292, 4
    %v302 = vsel %vm249, 0.0, %v301
    %v303 = vrot.slane %v296, 4
    %v304 = vsel %vm249, 0.0, %v303
    %v305 = vrot.slane %v239, 4
    %v306 = vsel %vm249, %v305, %v227
    %v307 = vrot.slane %v227, 4
    %v308 = vsel %vm249, %v239, %v307
    %v310 = vunpack.c.l.s4 1983009808
    %v311 = vunpack.c.0.s8 %v310
    %v312 = vperm.slane %v306, %v311
    %v314 = vunpack.c.l.s4 1983009808
    %v315 = vunpack.c.0.s8 %v314
    %v316 = vperm.slane %v308, %v315
    %v317 = vrot.slane %v245, 4
    %v318 = vsel %vm249, %v317, %v233
    %v319 = vrot.slane %v233, 4
    %v320 = vsel %vm249, %v245, %v319
    %v322 = vunpack.c.l.s4 1983009808
    %v323 = vunpack.c.0.s8 %v322
    %v324 = vperm.slane %v318, %v323
    %v326 = vunpack.c.l.s4 1983009808
    %v327 = vunpack.c.0.s8 %v326
    %v328 = vperm.slane %v320, %v327
    %v329 = vrot.slane %v324, 4
    %v330 = vsel %vm249, %v329, %v312
    %v331 = vrot.slane %v312, 4
    %v332 = vsel %vm249, %v324, %v331
    %v334 = vunpack.c.l.s4 1934713408
    %v335 = vunpack.c.0.s8 %v334
    %v336 = vperm.slane %v330, %v335
    %v338 = vunpack.c.l.s4 1934713408
    %v339 = vunpack.c.0.s8 %v338
    %v340 = vperm.slane %v332, %v339
    %v341 = vrot.slane %v328, 4
    %v342 = vsel %vm249, %v341, %v316
    %v343 = vrot.slane %v316, 4
    %v344 = vsel %vm249, %v328, %v343
    %v346 = vunpack.c.l.s4 1934713408
    %v347 = vunpack.c.0.s8 %v346
    %v348 = vperm.slane %v342, %v347
    %v350 = vunpack.c.l.s4 1934713408
    %v351 = vunpack.c.0.s8 %v350
    %v352 = vperm.slane %v344, %v351
    %v353 = vrot.slane %v336, 4
    %v354 = vsel %vm249, 0.0, %v353
    %v355 = vrot.slane %v340, 4
    %v356 = vsel %vm249, 0.0, %v355
    %v357 = vrot.slane %v348, 4
    %v358 = vsel %vm249, 0.0, %v357
    %v359 = vrot.slane %v352, 4
    %v360 = vsel %vm249, 0.0, %v359
    %v361 = vsel %vm249, %v299, %v280
    %v363 = vunpack.c.l.s4 1983009808
    %v364 = vunpack.c.0.s8 %v363
    %v365 = vperm.slane %v361, %v364
    %v366 = vrot.slane %v300, 4
    %v367 = vsel %vm249, %v366, %v298
    %v369 = vunpack.c.l.s4 1983009808
    %v370 = vunpack.c.0.s8 %v369
    %v371 = vperm.slane %v367, %v370
    %v372 = vsel %vm249, %v303, %v292
    %v374 = vunpack.c.l.s4 1983009808
    %v375 = vunpack.c.0.s8 %v374
    %v376 = vperm.slane %v372, %v375
    %v377 = vrot.slane %v304, 4
    %v378 = vsel %vm249, %v377, %v302
    %v380 = vunpack.c.l.s4 1983009808
    %v381 = vunpack.c.0.s8 %v380
    %v382 = vperm.slane %v378, %v381
    %v383 = vrot.slane %v371, 4
    %v384 = vsel %vm249, %v383, %v365
    %v385 = vrot.slane %v365, 4
    %v386 = vsel %vm249, %v371, %v385
    %v388 = vunpack.c.l.s4 1934713408
    %v389 = vunpack.c.0.s8 %v388
    %v390 = vperm.slane %v384, %v389
    %v392 = vunpack.c.l.s4 1934713408
    %v393 = vunpack.c.0.s8 %v392
    %v394 = vperm.slane %v386, %v393
    %v395 = vrot.slane %v382, 4
    %v396 = vsel %vm249, %v395, %v376
    %v397 = vrot.slane %v376, 4
    %v398 = vsel %vm249, %v382, %v397
    %v400 = vunpack.c.l.s4 1934713408
    %v401 = vunpack.c.0.s8 %v400
    %v402 = vperm.slane %v396, %v401
    %v404 = vunpack.c.l.s4 1934713408
    %v405 = vunpack.c.0.s8 %v404
    %v406 = vperm.slane %v398, %v405
    %v407 = vrot.slane %v402, 4
    %v408 = vsel %vm249, %v407, %v390
    %v409 = vrot.slane %v390, 4
    %v410 = vsel %vm249, %v402, %v409
    %v411 = vrot.slane %v406, 4
    %v412 = vsel %vm249, %v411, %v394
    %v413 = vrot.slane %v394, 4
    %v414 = vsel %vm249, %v406, %v413
    %v415 = vsel %vm249, %v355, %v336
    %v417 = vunpack.c.l.s4 1983009808
    %v418 = vunpack.c.0.s8 %v417
    %v419 = vperm.slane %v415, %v418
    %v420 = vrot.slane %v356, 4
    %v421 = vsel %vm249, %v420, %v354
    %v423 = vunpack.c.l.s4 1983009808
    %v424 = vunpack.c.0.s8 %v423
    %v425 = vperm.slane %v421, %v424
    %v426 = vsel %vm249, %v359, %v348
    %v428 = vunpack.c.l.s4 1983009808
    %v429 = vunpack.c.0.s8 %v428
    %v430 = vperm.slane %v426, %v429
    %v431 = vrot.slane %v360, 4
    %v432 = vsel %vm249, %v431, %v358
    %v434 = vunpack.c.l.s4 1983009808
    %v435 = vunpack.c.0.s8 %v434
    %v436 = vperm.slane %v432, %v435
    %v437 = vrot.slane %v425, 4
    %v438 = vsel %vm249, %v437, %v419
    %v439 = vrot.slane %v419, 4
    %v440 = vsel %vm249, %v425, %v439
    %v442 = vunpack.c.l.s4 1934713408
    %v443 = vunpack.c.0.s8 %v442
    %v444 = vperm.slane %v438, %v443
    %v446 = vunpack.c.l.s4 1934713408
    %v447 = vunpack.c.0.s8 %v446
    %v448 = vperm.slane %v440, %v447
    %v449 = vrot.slane %v436, 4
    %v450 = vsel %vm249, %v449, %v430
    %v451 = vrot.slane %v430, 4
    %v452 = vsel %vm249, %v436, %v451
    %v454 = vunpack.c.l.s4 1934713408
    %v455 = vunpack.c.0.s8 %v454
    %v456 = vperm.slane %v450, %v455
    %v458 = vunpack.c.l.s4 1934713408
    %v459 = vunpack.c.0.s8 %v458
    %v460 = vperm.slane %v452, %v459
    %v461 = vrot.slane %v456, 4
    %v462 = vsel %vm249, %v461, %v444
    %v463 = vrot.slane %v444, 4
    %v464 = vsel %vm249, %v456, %v463
    %v465 = vrot.slane %v460, 4
    %v466 = vsel %vm249, %v465, %v448
    %v467 = vrot.slane %v448, 4
    %v468 = vsel %vm249, %v460, %v467
    %v469 = vpack.c.bf16 %v408, %v408
    %v470 = vpack.c.bf16 %v410, %v410
    %v471 = vpack.c.bf16 %v412, %v412
    %v472 = vpack.c.bf16 %v414, %v414
    %v473 = vpack.c.bf16 %v462, %v462
    %v474 = vpack.c.bf16 %v464, %v464
    %v475 = vpack.c.bf16 %v466, %v466
    %v476 = vpack.c.bf16 %v468, %v468
    %481 = vrot.lane.b32.xlu0 %v190, 120
    %v482 = vpop.permute.xlu0 %481
    %483 = vrot.lane.b32.xlu0 %v192, 120
    %v484 = vpop.permute.xlu0 %483
    %485 = vrot.lane.b32.xlu0 %v195, 120
    %v486 = vpop.permute.xlu0 %485
    %487 = vrot.lane.b32.xlu0 %v197, 120
    %v488 = vpop.permute.xlu0 %487
    %493 = vrot.lane.b32.xlu0 %v190, 112
    %v494 = vpop.permute.xlu0 %493
    %495 = vrot.lane.b32.xlu0 %v192, 112
    %v496 = vpop.permute.xlu0 %495
    %497 = vrot.lane.b32.xlu0 %v195, 112
    %v498 = vpop.permute.xlu0 %497
    %499 = vrot.lane.b32.xlu0 %v197, 112
    %v500 = vpop.permute.xlu0 %499
    %505 = vrot.lane.b32.xlu0 %v190, 104
    %v506 = vpop.permute.xlu0 %505
    %507 = vrot.lane.b32.xlu0 %v192, 104
    %v508 = vpop.permute.xlu0 %507
    %509 = vrot.lane.b32.xlu0 %v195, 104
    %v510 = vpop.permute.xlu0 %509
    %511 = vrot.lane.b32.xlu0 %v197, 104
    %v512 = vpop.permute.xlu0 %511
    %v517 = vrot.slane %v494, 4
    %v518 = vsel %vm249, %v517, %v190
    %v519 = vrot.slane %v190, 4
    %v520 = vsel %vm249, %v494, %v519
    %v522 = vunpack.c.l.s4 1983009808
    %v523 = vunpack.c.0.s8 %v522
    %v524 = vperm.slane %v518, %v523
    %v526 = vunpack.c.l.s4 1983009808
    %v527 = vunpack.c.0.s8 %v526
    %v528 = vperm.slane %v520, %v527
    %v529 = vrot.slane %v506, 4
    %v530 = vsel %vm249, %v529, %v482
    %v531 = vrot.slane %v482, 4
    %v532 = vsel %vm249, %v506, %v531
    %v534 = vunpack.c.l.s4 1983009808
    %v535 = vunpack.c.0.s8 %v534
    %v536 = vperm.slane %v530, %v535
    %v538 = vunpack.c.l.s4 1983009808
    %v539 = vunpack.c.0.s8 %v538
    %v540 = vperm.slane %v532, %v539
    %v541 = vrot.slane %v536, 4
    %v542 = vsel %vm249, %v541, %v524
    %v543 = vrot.slane %v524, 4
    %v544 = vsel %vm249, %v536, %v543
    %v546 = vunpack.c.l.s4 1934713408
    %v547 = vunpack.c.0.s8 %v546
    %v548 = vperm.slane %v542, %v547
    %v550 = vunpack.c.l.s4 1934713408
    %v551 = vunpack.c.0.s8 %v550
    %v552 = vperm.slane %v544, %v551
    %v553 = vrot.slane %v540, 4
    %v554 = vsel %vm249, %v553, %v528
    %v555 = vrot.slane %v528, 4
    %v556 = vsel %vm249, %v540, %v555
    %v558 = vunpack.c.l.s4 1934713408
    %v559 = vunpack.c.0.s8 %v558
    %v560 = vperm.slane %v554, %v559
    %v562 = vunpack.c.l.s4 1934713408
    %v563 = vunpack.c.0.s8 %v562
    %v564 = vperm.slane %v556, %v563
    %v565 = vrot.slane %v548, 4
    %v566 = vsel %vm249, 0.0, %v565
    %v567 = vrot.slane %v552, 4
    %v568 = vsel %vm249, 0.0, %v567
    %v569 = vrot.slane %v560, 4
    %v570 = vsel %vm249, 0.0, %v569
    %v571 = vrot.slane %v564, 4
    %v572 = vsel %vm249, 0.0, %v571
    %v573 = vrot.slane %v496, 4
    %v574 = vsel %vm249, %v573, %v192
    %v575 = vrot.slane %v192, 4
    %v576 = vsel %vm249, %v496, %v575
    %v578 = vunpack.c.l.s4 1983009808
    %v579 = vunpack.c.0.s8 %v578
    %v580 = vperm.slane %v574, %v579
    %v582 = vunpack.c.l.s4 1983009808
    %v583 = vunpack.c.0.s8 %v582
    %v584 = vperm.slane %v576, %v583
    %v585 = vrot.slane %v508, 4
    %v586 = vsel %vm249, %v585, %v484
    %v587 = vrot.slane %v484, 4
    %v588 = vsel %vm249, %v508, %v587
    %v590 = vunpack.c.l.s4 1983009808
    %v591 = vunpack.c.0.s8 %v590
    %v592 = vperm.slane %v586, %v591
    %v594 = vunpack.c.l.s4 1983009808
    %v595 = vunpack.c.0.s8 %v594
    %v596 = vperm.slane %v588, %v595
    %v597 = vrot.slane %v592, 4
    %v598 = vsel %vm249, %v597, %v580
    %v599 = vrot.slane %v580, 4
    %v600 = vsel %vm249, %v592, %v599
    %v602 = vunpack.c.l.s4 1934713408
    %v603 = vunpack.c.0.s8 %v602
    %v604 = vperm.slane %v598, %v603
    %v606 = vunpack.c.l.s4 1934713408
    %v607 = vunpack.c.0.s8 %v606
    %v608 = vperm.slane %v600, %v607
    %v609 = vrot.slane %v596, 4
    %v610 = vsel %vm249, %v609, %v584
    %v611 = vrot.slane %v584, 4
    %v612 = vsel %vm249, %v596, %v611
    %v614 = vunpack.c.l.s4 1934713408
    %v615 = vunpack.c.0.s8 %v614
    %v616 = vperm.slane %v610, %v615
    %v618 = vunpack.c.l.s4 1934713408
    %v619 = vunpack.c.0.s8 %v618
    %v620 = vperm.slane %v612, %v619
    %v621 = vrot.slane %v604, 4
    %v622 = vsel %vm249, 0.0, %v621
    %v623 = vrot.slane %v608, 4
    %v624 = vsel %vm249, 0.0, %v623
    %v625 = vrot.slane %v616, 4
    %v626 = vsel %vm249, 0.0, %v625
    %v627 = vrot.slane %v620, 4
    %v628 = vsel %vm249, 0.0, %v627
    %v629 = vrot.slane %v498, 4
    %v630 = vsel %vm249, %v629, %v195
    %v631 = vrot.slane %v195, 4
    %v632 = vsel %vm249, %v498, %v631
    %v634 = vunpack.c.l.s4 1983009808
    %v635 = vunpack.c.0.s8 %v634
    %v636 = vperm.slane %v630, %v635
    %v638 = vunpack.c.l.s4 1983009808
    %v639 = vunpack.c.0.s8 %v638
    %v640 = vperm.slane %v632, %v639
    %v641 = vrot.slane %v510, 4
    %v642 = vsel %vm249, %v641, %v486
    %v643 = vrot.slane %v486, 4
    %v644 = vsel %vm249, %v510, %v643
    %v646 = vunpack.c.l.s4 1983009808
    %v647 = vunpack.c.0.s8 %v646
    %v648 = vperm.slane %v642, %v647
    %v650 = vunpack.c.l.s4 1983009808
    %v651 = vunpack.c.0.s8 %v650
    %v652 = vperm.slane %v644, %v651
    %v653 = vrot.slane %v648, 4
    %v654 = vsel %vm249, %v653, %v636
    %v655 = vrot.slane %v636, 4
    %v656 = vsel %vm249, %v648, %v655
    %v658 = vunpack.c.l.s4 1934713408
    %v659 = vunpack.c.0.s8 %v658
    %v660 = vperm.slane %v654, %v659
    %v662 = vunpack.c.l.s4 1934713408
    %v663 = vunpack.c.0.s8 %v662
    %v664 = vperm.slane %v656, %v663
    %v665 = vrot.slane %v652, 4
    %v666 = vsel %vm249, %v665, %v640
    %v667 = vrot.slane %v640, 4
    %v668 = vsel %vm249, %v652, %v667
    %v670 = vunpack.c.l.s4 1934713408
    %v671 = vunpack.c.0.s8 %v670
    %v672 = vperm.slane %v666, %v671
    %v674 = vunpack.c.l.s4 1934713408
    %v675 = vunpack.c.0.s8 %v674
    %v676 = vperm.slane %v668, %v675
    %v677 = vrot.slane %v660, 4
    %v678 = vsel %vm249, 0.0, %v677
    %v679 = vrot.slane %v664, 4
    %v680 = vsel %vm249, 0.0, %v679
    %v681 = vrot.slane %v672, 4
    %v682 = vsel %vm249, 0.0, %v681
    %v683 = vrot.slane %v676, 4
    %v684 = vsel %vm249, 0.0, %v683
    %v685 = vrot.slane %v500, 4
    %v686 = vsel %vm249, %v685, %v197
    %v687 = vrot.slane %v197, 4
    %v688 = vsel %vm249, %v500, %v687
    %v690 = vunpack.c.l.s4 1983009808
    %v691 = vunpack.c.0.s8 %v690
    %v692 = vperm.slane %v686, %v691
    %v694 = vunpack.c.l.s4 1983009808
    %v695 = vunpack.c.0.s8 %v694
    %v696 = vperm.slane %v688, %v695
    %v697 = vrot.slane %v512, 4
    %v698 = vsel %vm249, %v697, %v488
    %v699 = vrot.slane %v488, 4
    %v700 = vsel %vm249, %v512, %v699
    %v702 = vunpack.c.l.s4 1983009808
    %v703 = vunpack.c.0.s8 %v702
    %v704 = vperm.slane %v698, %v703
    %v706 = vunpack.c.l.s4 1983009808
    %v707 = vunpack.c.0.s8 %v706
    %v708 = vperm.slane %v700, %v707
    %v709 = vrot.slane %v704, 4
    %v710 = vsel %vm249, %v709, %v692
    %v711 = vrot.slane %v692, 4
    %v712 = vsel %vm249, %v704, %v711
    %v714 = vunpack.c.l.s4 1934713408
    %v715 = vunpack.c.0.s8 %v714
    %v716 = vperm.slane %v710, %v715
    %v718 = vunpack.c.l.s4 1934713408
    %v719 = vunpack.c.0.s8 %v718
    %v720 = vperm.slane %v712, %v719
    %v721 = vrot.slane %v708, 4
    %v722 = vsel %vm249, %v721, %v696
    %v723 = vrot.slane %v696, 4
    %v724 = vsel %vm249, %v708, %v723
    %v726 = vunpack.c.l.s4 1934713408
    %v727 = vunpack.c.0.s8 %v726
    %v728 = vperm.slane %v722, %v727
    %v730 = vunpack.c.l.s4 1934713408
    %v731 = vunpack.c.0.s8 %v730
    %v732 = vperm.slane %v724, %v731
    %v733 = vrot.slane %v716, 4
    %v734 = vsel %vm249, 0.0, %v733
    %v735 = vrot.slane %v720, 4
    %v736 = vsel %vm249, 0.0, %v735
    %v737 = vrot.slane %v728, 4
    %v738 = vsel %vm249, 0.0, %v737
    %v739 = vrot.slane %v732, 4
    %v740 = vsel %vm249, 0.0, %v739
    %v741 = vsel %vm249, %v567, %v548
    %v743 = vunpack.c.l.s4 1983009808
    %v744 = vunpack.c.0.s8 %v743
    %v745 = vperm.slane %v741, %v744
    %v746 = vrot.slane %v568, 4
    %v747 = vsel %vm249, %v746, %v566
    %v749 = vunpack.c.l.s4 1983009808
    %v750 = vunpack.c.0.s8 %v749
    %v751 = vperm.slane %v747, %v750
    %v752 = vsel %vm249, %v571, %v560
    %v754 = vunpack.c.l.s4 1983009808
    %v755 = vunpack.c.0.s8 %v754
    %v756 = vperm.slane %v752, %v755
    %v757 = vrot.slane %v572, 4
    %v758 = vsel %vm249, %v757, %v570
    %v760 = vunpack.c.l.s4 1983009808
    %v761 = vunpack.c.0.s8 %v760
    %v762 = vperm.slane %v758, %v761
    %v763 = vrot.slane %v751, 4
    %v764 = vsel %vm249, %v763, %v745
    %v765 = vrot.slane %v745, 4
    %v766 = vsel %vm249, %v751, %v765
    %v768 = vunpack.c.l.s4 1934713408
    %v769 = vunpack.c.0.s8 %v768
    %v770 = vperm.slane %v764, %v769
    %v772 = vunpack.c.l.s4 1934713408
    %v773 = vunpack.c.0.s8 %v772
    %v774 = vperm.slane %v766, %v773
    %v775 = vrot.slane %v762, 4
    %v776 = vsel %vm249, %v775, %v756
    %v777 = vrot.slane %v756, 4
    %v778 = vsel %vm249, %v762, %v777
    %v780 = vunpack.c.l.s4 1934713408
    %v781 = vunpack.c.0.s8 %v780
    %v782 = vperm.slane %v776, %v781
    %v784 = vunpack.c.l.s4 1934713408
    %v785 = vunpack.c.0.s8 %v784
    %v786 = vperm.slane %v778, %v785
    %v787 = vrot.slane %v782, 4
    %v788 = vsel %vm249, %v787, %v770
    %v789 = vrot.slane %v770, 4
    %v790 = vsel %vm249, %v782, %v789
    %v791 = vrot.slane %v786, 4
    %v792 = vsel %vm249, %v791, %v774
    %v793 = vrot.slane %v774, 4
    %v794 = vsel %vm249, %v786, %v793
    %v795 = vsel %vm249, %v623, %v604
    %v797 = vunpack.c.l.s4 1983009808
    %v798 = vunpack.c.0.s8 %v797
    %v799 = vperm.slane %v795, %v798
    %v800 = vrot.slane %v624, 4
    %v801 = vsel %vm249, %v800, %v622
    %v803 = vunpack.c.l.s4 1983009808
    %v804 = vunpack.c.0.s8 %v803
    %v805 = vperm.slane %v801, %v804
    %v806 = vsel %vm249, %v627, %v616
    %v808 = vunpack.c.l.s4 1983009808
    %v809 = vunpack.c.0.s8 %v808
    %v810 = vperm.slane %v806, %v809
    %v811 = vrot.slane %v628, 4
    %v812 = vsel %vm249, %v811, %v626
    %v814 = vunpack.c.l.s4 1983009808
    %v815 = vunpack.c.0.s8 %v814
    %v816 = vperm.slane %v812, %v815
    %v817 = vrot.slane %v805, 4
    %v818 = vsel %vm249, %v817, %v799
    %v819 = vrot.slane %v799, 4
    %v820 = vsel %vm249, %v805, %v819
    %v822 = vunpack.c.l.s4 1934713408
    %v823 = vunpack.c.0.s8 %v822
    %v824 = vperm.slane %v818, %v823
    %v826 = vunpack.c.l.s4 1934713408
    %v827 = vunpack.c.0.s8 %v826
    %v828 = vperm.slane %v820, %v827
    %v829 = vrot.slane %v816, 4
    %v830 = vsel %vm249, %v829, %v810
    %v831 = vrot.slane %v810, 4
    %v832 = vsel %vm249, %v816, %v831
    %v834 = vunpack.c.l.s4 1934713408
    %v835 = vunpack.c.0.s8 %v834
    %v836 = vperm.slane %v830, %v835
    %v838 = vunpack.c.l.s4 1934713408
    %v839 = vunpack.c.0.s8 %v838
    %v840 = vperm.slane %v832, %v839
    %v841 = vrot.slane %v836, 4
    %v842 = vsel %vm249, %v841, %v824
    %v843 = vrot.slane %v824, 4
    %v844 = vsel %vm249, %v836, %v843
    %v845 = vrot.slane %v840, 4
    %v846 = vsel %vm249, %v845, %v828
    %v847 = vrot.slane %v828, 4
    %v848 = vsel %vm249, %v840, %v847
    %v849 = vsel %vm249, %v679, %v660
    %v851 = vunpack.c.l.s4 1983009808
    %v852 = vunpack.c.0.s8 %v851
    %v853 = vperm.slane %v849, %v852
    %v854 = vrot.slane %v680, 4
    %v855 = vsel %vm249, %v854, %v678
    %v857 = vunpack.c.l.s4 1983009808
    %v858 = vunpack.c.0.s8 %v857
    %v859 = vperm.slane %v855, %v858
    %v860 = vsel %vm249, %v683, %v672
    %v862 = vunpack.c.l.s4 1983009808
    %v863 = vunpack.c.0.s8 %v862
    %v864 = vperm.slane %v860, %v863
    %v865 = vrot.slane %v684, 4
    %v866 = vsel %vm249, %v865, %v682
    %v868 = vunpack.c.l.s4 1983009808
    %v869 = vunpack.c.0.s8 %v868
    %v870 = vperm.slane %v866, %v869
    %v871 = vrot.slane %v859, 4
    %v872 = vsel %vm249, %v871, %v853
    %v873 = vrot.slane %v853, 4
    %v874 = vsel %vm249, %v859, %v873
    %v876 = vunpack.c.l.s4 1934713408
    %v877 = vunpack.c.0.s8 %v876
    %v878 = vperm.slane %v872, %v877
    %v880 = vunpack.c.l.s4 1934713408
    %v881 = vunpack.c.0.s8 %v880
    %v882 = vperm.slane %v874, %v881
    %v883 = vrot.slane %v870, 4
    %v884 = vsel %vm249, %v883, %v864
    %v885 = vrot.slane %v864, 4
    %v886 = vsel %vm249, %v870, %v885
    %v888 = vunpack.c.l.s4 1934713408
    %v889 = vunpack.c.0.s8 %v888
    %v890 = vperm.slane %v884, %v889
    %v892 = vunpack.c.l.s4 1934713408
    %v893 = vunpack.c.0.s8 %v892
    %v894 = vperm.slane %v886, %v893
    %v895 = vrot.slane %v890, 4
    %v896 = vsel %vm249, %v895, %v878
    %v897 = vrot.slane %v878, 4
    %v898 = vsel %vm249, %v890, %v897
    %v899 = vrot.slane %v894, 4
    %v900 = vsel %vm249, %v899, %v882
    %v901 = vrot.slane %v882, 4
    %v902 = vsel %vm249, %v894, %v901
    %v903 = vsel %vm249, %v735, %v716
    %v905 = vunpack.c.l.s4 1983009808
    %v906 = vunpack.c.0.s8 %v905
    %v907 = vperm.slane %v903, %v906
    %v908 = vrot.slane %v736, 4
    %v909 = vsel %vm249, %v908, %v734
    %v911 = vunpack.c.l.s4 1983009808
    %v912 = vunpack.c.0.s8 %v911
    %v913 = vperm.slane %v909, %v912
    %v914 = vsel %vm249, %v739, %v728
    %v916 = vunpack.c.l.s4 1983009808
    %v917 = vunpack.c.0.s8 %v916
    %v918 = vperm.slane %v914, %v917
    %v919 = vrot.slane %v740, 4
    %v920 = vsel %vm249, %v919, %v738
    %v922 = vunpack.c.l.s4 1983009808
    %v923 = vunpack.c.0.s8 %v922
    %v924 = vperm.slane %v920, %v923
    %v925 = vrot.slane %v913, 4
    %v926 = vsel %vm249, %v925, %v907
    %v927 = vrot.slane %v907, 4
    %v928 = vsel %vm249, %v913, %v927
    %v930 = vunpack.c.l.s4 1934713408
    %v931 = vunpack.c.0.s8 %v930
    %v932 = vperm.slane %v926, %v931
    %v934 = vunpack.c.l.s4 1934713408
    %v935 = vunpack.c.0.s8 %v934
    %v936 = vperm.slane %v928, %v935
    %v937 = vrot.slane %v924, 4
    %v938 = vsel %vm249, %v937, %v918
    %v939 = vrot.slane %v918, 4
    %v940 = vsel %vm249, %v924, %v939
    %v942 = vunpack.c.l.s4 1934713408
    %v943 = vunpack.c.0.s8 %v942
    %v944 = vperm.slane %v938, %v943
    %v946 = vunpack.c.l.s4 1934713408
    %v947 = vunpack.c.0.s8 %v946
    %v948 = vperm.slane %v940, %v947
    %v949 = vrot.slane %v944, 4
    %v950 = vsel %vm249, %v949, %v932
    %v951 = vrot.slane %v932, 4
    %v952 = vsel %vm249, %v944, %v951
    %v953 = vrot.slane %v948, 4
    %v954 = vsel %vm249, %v953, %v936
    %v955 = vrot.slane %v936, 4
    %v956 = vsel %vm249, %v948, %v955
    %v957 = vpack.c.bf16 %v788, %v788
    %v958 = vpack.c.bf16 %v842, %v842
    %v959 = vpack.c.bf16 %v790, %v790
    %v960 = vpack.c.bf16 %v844, %v844
    %v961 = vpack.c.bf16 %v792, %v792
    %v962 = vpack.c.bf16 %v846, %v846
    %v963 = vpack.c.bf16 %v794, %v794
    %v964 = vpack.c.bf16 %v848, %v848
    %v965 = vpack.c.bf16 %v896, %v896
    %v966 = vpack.c.bf16 %v950, %v950
    %v967 = vpack.c.bf16 %v898, %v898
    %v968 = vpack.c.bf16 %v952, %v952
    %v969 = vpack.c.bf16 %v900, %v900
    %v970 = vpack.c.bf16 %v954, %v954
    %v971 = vpack.c.bf16 %v902, %v902
    %v972 = vpack.c.bf16 %v956, %v956
    %977 = vrot.lane.b32.xlu0 %v217, 120
    %v978 = vpop.permute.xlu0 %977
    %979 = vrot.lane.b32.xlu0 %v219, 120
    %v980 = vpop.permute.xlu0 %979
    %981 = vrot.lane.b32.xlu0 %v222, 120
    %v982 = vpop.permute.xlu0 %981
    %983 = vrot.lane.b32.xlu0 %v224, 120
    %v984 = vpop.permute.xlu0 %983
    %989 = vrot.lane.b32.xlu0 %v217, 112
    %v990 = vpop.permute.xlu0 %989
    %991 = vrot.lane.b32.xlu0 %v219, 112
    %v992 = vpop.permute.xlu0 %991
    %993 = vrot.lane.b32.xlu0 %v222, 112
    %v994 = vpop.permute.xlu0 %993
    %995 = vrot.lane.b32.xlu0 %v224, 112
    %v996 = vpop.permute.xlu0 %995
    %1001 = vrot.lane.b32.xlu0 %v217, 104
    %v1002 = vpop.permute.xlu0 %1001
    %1003 = vrot.lane.b32.xlu0 %v219, 104
    %v1004 = vpop.permute.xlu0 %1003
    %1005 = vrot.lane.b32.xlu0 %v222, 104
    %v1006 = vpop.permute.xlu0 %1005
    %1007 = vrot.lane.b32.xlu0 %v224, 104
    %v1008 = vpop.permute.xlu0 %1007
    %v1013 = vrot.slane %v990, 4
    %v1014 = vsel %vm249, %v1013, %v217
    %v1015 = vrot.slane %v217, 4
    %v1016 = vsel %vm249, %v990, %v1015
    %v1018 = vunpack.c.l.s4 1983009808
    %v1019 = vunpack.c.0.s8 %v1018
    %v1020 = vperm.slane %v1014, %v1019
    %v1022 = vunpack.c.l.s4 1983009808
    %v1023 = vunpack.c.0.s8 %v1022
    %v1024 = vperm.slane %v1016, %v1023
    %v1025 = vrot.slane %v1002, 4
    %v1026 = vsel %vm249, %v1025, %v978
    %v1027 = vrot.slane %v978, 4
    %v1028 = vsel %vm249, %v1002, %v1027
    %v1030 = vunpack.c.l.s4 1983009808
    %v1031 = vunpack.c.0.s8 %v1030
    %v1032 = vperm.slane %v1026, %v1031
    %v1034 = vunpack.c.l.s4 1983009808
    %v1035 = vunpack.c.0.s8 %v1034
    %v1036 = vperm.slane %v1028, %v1035
    %v1037 = vrot.slane %v1032, 4
    %v1038 = vsel %vm249, %v1037, %v1020
    %v1039 = vrot.slane %v1020, 4
    %v1040 = vsel %vm249, %v1032, %v1039
    %v1042 = vunpack.c.l.s4 1934713408
    %v1043 = vunpack.c.0.s8 %v1042
    %v1044 = vperm.slane %v1038, %v1043
    %v1046 = vunpack.c.l.s4 1934713408
    %v1047 = vunpack.c.0.s8 %v1046
    %v1048 = vperm.slane %v1040, %v1047
    %v1049 = vrot.slane %v1036, 4
    %v1050 = vsel %vm249, %v1049, %v1024
    %v1051 = vrot.slane %v1024, 4
    %v1052 = vsel %vm249, %v1036, %v1051
    %v1054 = vunpack.c.l.s4 1934713408
    %v1055 = vunpack.c.0.s8 %v1054
    %v1056 = vperm.slane %v1050, %v1055
    %v1058 = vunpack.c.l.s4 1934713408
    %v1059 = vunpack.c.0.s8 %v1058
    %v1060 = vperm.slane %v1052, %v1059
    %v1061 = vrot.slane %v1044, 4
    %v1062 = vsel %vm249, 0.0, %v1061
    %v1063 = vrot.slane %v1048, 4
    %v1064 = vsel %vm249, 0.0, %v1063
    %v1065 = vrot.slane %v1056, 4
    %v1066 = vsel %vm249, 0.0, %v1065
    %v1067 = vrot.slane %v1060, 4
    %v1068 = vsel %vm249, 0.0, %v1067
    %v1069 = vrot.slane %v992, 4
    %v1070 = vsel %vm249, %v1069, %v219
    %v1071 = vrot.slane %v219, 4
    %v1072 = vsel %vm249, %v992, %v1071
    %v1074 = vunpack.c.l.s4 1983009808
    %v1075 = vunpack.c.0.s8 %v1074
    %v1076 = vperm.slane %v1070, %v1075
    %v1078 = vunpack.c.l.s4 1983009808
    %v1079 = vunpack.c.0.s8 %v1078
    %v1080 = vperm.slane %v1072, %v1079
    %v1081 = vrot.slane %v1004, 4
    %v1082 = vsel %vm249, %v1081, %v980
    %v1083 = vrot.slane %v980, 4
    %v1084 = vsel %vm249, %v1004, %v1083
    %v1086 = vunpack.c.l.s4 1983009808
    %v1087 = vunpack.c.0.s8 %v1086
    %v1088 = vperm.slane %v1082, %v1087
    %v1090 = vunpack.c.l.s4 1983009808
    %v1091 = vunpack.c.0.s8 %v1090
    %v1092 = vperm.slane %v1084, %v1091
    %v1093 = vrot.slane %v1088, 4
    %v1094 = vsel %vm249, %v1093, %v1076
    %v1095 = vrot.slane %v1076, 4
    %v1096 = vsel %vm249, %v1088, %v1095
    %v1098 = vunpack.c.l.s4 1934713408
    %v1099 = vunpack.c.0.s8 %v1098
    %v1100 = vperm.slane %v1094, %v1099
    %v1102 = vunpack.c.l.s4 1934713408
    %v1103 = vunpack.c.0.s8 %v1102
    %v1104 = vperm.slane %v1096, %v1103
    %v1105 = vrot.slane %v1092, 4
    %v1106 = vsel %vm249, %v1105, %v1080
    %v1107 = vrot.slane %v1080, 4
    %v1108 = vsel %vm249, %v1092, %v1107
    %v1110 = vunpack.c.l.s4 1934713408
    %v1111 = vunpack.c.0.s8 %v1110
    %v1112 = vperm.slane %v1106, %v1111
    %v1114 = vunpack.c.l.s4 1934713408
    %v1115 = vunpack.c.0.s8 %v1114
    %v1116 = vperm.slane %v1108, %v1115
    %v1117 = vrot.slane %v1100, 4
    %v1118 = vsel %vm249, 0.0, %v1117
    %v1119 = vrot.slane %v1104, 4
    %v1120 = vsel %vm249, 0.0, %v1119
    %v1121 = vrot.slane %v1112, 4
    %v1122 = vsel %vm249, 0.0, %v1121
    %v1123 = vrot.slane %v1116, 4
    %v1124 = vsel %vm249, 0.0, %v1123
    %v1125 = vrot.slane %v994, 4
    %v1126 = vsel %vm249, %v1125, %v222
    %v1127 = vrot.slane %v222, 4
    %v1128 = vsel %vm249, %v994, %v1127
    %v1130 = vunpack.c.l.s4 1983009808
    %v1131 = vunpack.c.0.s8 %v1130
    %v1132 = vperm.slane %v1126, %v1131
    %v1134 = vunpack.c.l.s4 1983009808
    %v1135 = vunpack.c.0.s8 %v1134
    %v1136 = vperm.slane %v1128, %v1135
    %v1137 = vrot.slane %v1006, 4
    %v1138 = vsel %vm249, %v1137, %v982
    %v1139 = vrot.slane %v982, 4
    %v1140 = vsel %vm249, %v1006, %v1139
    %v1142 = vunpack.c.l.s4 1983009808
    %v1143 = vunpack.c.0.s8 %v1142
    %v1144 = vperm.slane %v1138, %v1143
    %v1146 = vunpack.c.l.s4 1983009808
    %v1147 = vunpack.c.0.s8 %v1146
    %v1148 = vperm.slane %v1140, %v1147
    %v1149 = vrot.slane %v1144, 4
    %v1150 = vsel %vm249, %v1149, %v1132
    %v1151 = vrot.slane %v1132, 4
    %v1152 = vsel %vm249, %v1144, %v1151
    %v1154 = vunpack.c.l.s4 1934713408
    %v1155 = vunpack.c.0.s8 %v1154
    %v1156 = vperm.slane %v1150, %v1155
    %v1158 = vunpack.c.l.s4 1934713408
    %v1159 = vunpack.c.0.s8 %v1158
    %v1160 = vperm.slane %v1152, %v1159
    %v1161 = vrot.slane %v1148, 4
    %v1162 = vsel %vm249, %v1161, %v1136
    %v1163 = vrot.slane %v1136, 4
    %v1164 = vsel %vm249, %v1148, %v1163
    %v1166 = vunpack.c.l.s4 1934713408
    %v1167 = vunpack.c.0.s8 %v1166
    %v1168 = vperm.slane %v1162, %v1167
    %v1170 = vunpack.c.l.s4 1934713408
    %v1171 = vunpack.c.0.s8 %v1170
    %v1172 = vperm.slane %v1164, %v1171
    %v1173 = vrot.slane %v1156, 4
    %v1174 = vsel %vm249, 0.0, %v1173
    %v1175 = vrot.slane %v1160, 4
    %v1176 = vsel %vm249, 0.0, %v1175
    %v1177 = vrot.slane %v1168, 4
    %v1178 = vsel %vm249, 0.0, %v1177
    %v1179 = vrot.slane %v1172, 4
    %v1180 = vsel %vm249, 0.0, %v1179
    %v1181 = vrot.slane %v996, 4
    %v1182 = vsel %vm249, %v1181, %v224
    %v1183 = vrot.slane %v224, 4
    %v1184 = vsel %vm249, %v996, %v1183
    %v1186 = vunpack.c.l.s4 1983009808
    %v1187 = vunpack.c.0.s8 %v1186
    %v1188 = vperm.slane %v1182, %v1187
    %v1190 = vunpack.c.l.s4 1983009808
    %v1191 = vunpack.c.0.s8 %v1190
    %v1192 = vperm.slane %v1184, %v1191
    %v1193 = vrot.slane %v1008, 4
    %v1194 = vsel %vm249, %v1193, %v984
    %v1195 = vrot.slane %v984, 4
    %v1196 = vsel %vm249, %v1008, %v1195
    %v1198 = vunpack.c.l.s4 1983009808
    %v1199 = vunpack.c.0.s8 %v1198
    %v1200 = vperm.slane %v1194, %v1199
    %v1202 = vunpack.c.l.s4 1983009808
    %v1203 = vunpack.c.0.s8 %v1202
    %v1204 = vperm.slane %v1196, %v1203
    %v1205 = vrot.slane %v1200, 4
    %v1206 = vsel %vm249, %v1205, %v1188
    %v1207 = vrot.slane %v1188, 4
    %v1208 = vsel %vm249, %v1200, %v1207
    %v1210 = vunpack.c.l.s4 1934713408
    %v1211 = vunpack.c.0.s8 %v1210
    %v1212 = vperm.slane %v1206, %v1211
    %v1214 = vunpack.c.l.s4 1934713408
    %v1215 = vunpack.c.0.s8 %v1214
    %v1216 = vperm.slane %v1208, %v1215
    %v1217 = vrot.slane %v1204, 4
    %v1218 = vsel %vm249, %v1217, %v1192
    %v1219 = vrot.slane %v1192, 4
    %v1220 = vsel %vm249, %v1204, %v1219
    %v1222 = vunpack.c.l.s4 1934713408
    %v1223 = vunpack.c.0.s8 %v1222
    %v1224 = vperm.slane %v1218, %v1223
    %v1226 = vunpack.c.l.s4 1934713408
    %v1227 = vunpack.c.0.s8 %v1226
    %v1228 = vperm.slane %v1220, %v1227
    %v1229 = vrot.slane %v1212, 4
    %v1230 = vsel %vm249, 0.0, %v1229
    %v1231 = vrot.slane %v1216, 4
    %v1232 = vsel %vm249, 0.0, %v1231
    %v1233 = vrot.slane %v1224, 4
    %v1234 = vsel %vm249, 0.0, %v1233
    %v1235 = vrot.slane %v1228, 4
    %v1236 = vsel %vm249, 0.0, %v1235
    %v1237 = vsel %vm249, %v1063, %v1044
    %v1239 = vunpack.c.l.s4 1983009808
    %v1240 = vunpack.c.0.s8 %v1239
    %v1241 = vperm.slane %v1237, %v1240
    %v1242 = vrot.slane %v1064, 4
    %v1243 = vsel %vm249, %v1242, %v1062
    %v1245 = vunpack.c.l.s4 1983009808
    %v1246 = vunpack.c.0.s8 %v1245
    %v1247 = vperm.slane %v1243, %v1246
    %v1248 = vsel %vm249, %v1067, %v1056
    %v1250 = vunpack.c.l.s4 1983009808
    %v1251 = vunpack.c.0.s8 %v1250
    %v1252 = vperm.slane %v1248, %v1251
    %v1253 = vrot.slane %v1068, 4
    %v1254 = vsel %vm249, %v1253, %v1066
    %v1256 = vunpack.c.l.s4 1983009808
    %v1257 = vunpack.c.0.s8 %v1256
    %v1258 = vperm.slane %v1254, %v1257
    %v1259 = vrot.slane %v1247, 4
    %v1260 = vsel %vm249, %v1259, %v1241
    %v1261 = vrot.slane %v1241, 4
    %v1262 = vsel %vm249, %v1247, %v1261
    %v1264 = vunpack.c.l.s4 1934713408
    %v1265 = vunpack.c.0.s8 %v1264
    %v1266 = vperm.slane %v1260, %v1265
    %v1268 = vunpack.c.l.s4 1934713408
    %v1269 = vunpack.c.0.s8 %v1268
    %v1270 = vperm.slane %v1262, %v1269
    %v1271 = vrot.slane %v1258, 4
    %v1272 = vsel %vm249, %v1271, %v1252
    %v1273 = vrot.slane %v1252, 4
    %v1274 = vsel %vm249, %v1258, %v1273
    %v1276 = vunpack.c.l.s4 1934713408
    %v1277 = vunpack.c.0.s8 %v1276
    %v1278 = vperm.slane %v1272, %v1277
    %v1280 = vunpack.c.l.s4 1934713408
    %v1281 = vunpack.c.0.s8 %v1280
    %v1282 = vperm.slane %v1274, %v1281
    %v1283 = vrot.slane %v1278, 4
    %v1284 = vsel %vm249, %v1283, %v1266
    %v1285 = vrot.slane %v1266, 4
    %v1286 = vsel %vm249, %v1278, %v1285
    %v1287 = vrot.slane %v1282, 4
    %v1288 = vsel %vm249, %v1287, %v1270
    %v1289 = vrot.slane %v1270, 4
    %v1290 = vsel %vm249, %v1282, %v1289
    %v1291 = vsel %vm249, %v1119, %v1100
    %v1293 = vunpack.c.l.s4 1983009808
    %v1294 = vunpack.c.0.s8 %v1293
    %v1295 = vperm.slane %v1291, %v1294
    %v1296 = vrot.slane %v1120, 4
    %v1297 = vsel %vm249, %v1296, %v1118
    %v1299 = vunpack.c.l.s4 1983009808
    %v1300 = vunpack.c.0.s8 %v1299
    %v1301 = vperm.slane %v1297, %v1300
    %v1302 = vsel %vm249, %v1123, %v1112
    %v1304 = vunpack.c.l.s4 1983009808
    %v1305 = vunpack.c.0.s8 %v1304
    %v1306 = vperm.slane %v1302, %v1305
    %v1307 = vrot.slane %v1124, 4
    %v1308 = vsel %vm249, %v1307, %v1122
    %v1310 = vunpack.c.l.s4 1983009808
    %v1311 = vunpack.c.0.s8 %v1310
    %v1312 = vperm.slane %v1308, %v1311
    %v1313 = vrot.slane %v1301, 4
    %v1314 = vsel %vm249, %v1313, %v1295
    %v1315 = vrot.slane %v1295, 4
    %v1316 = vsel %vm249, %v1301, %v1315
    %v1318 = vunpack.c.l.s4 1934713408
    %v1319 = vunpack.c.0.s8 %v1318
    %v1320 = vperm.slane %v1314, %v1319
    %v1322 = vunpack.c.l.s4 1934713408
    %v1323 = vunpack.c.0.s8 %v1322
    %v1324 = vperm.slane %v1316, %v1323
    %v1325 = vrot.slane %v1312, 4
    %v1326 = vsel %vm249, %v1325, %v1306
    %v1327 = vrot.slane %v1306, 4
    %v1328 = vsel %vm249, %v1312, %v1327
    %v1330 = vunpack.c.l.s4 1934713408
    %v1331 = vunpack.c.0.s8 %v1330
    %v1332 = vperm.slane %v1326, %v1331
    %v1334 = vunpack.c.l.s4 1934713408
    %v1335 = vunpack.c.0.s8 %v1334
    %v1336 = vperm.slane %v1328, %v1335
    %v1337 = vrot.slane %v1332, 4
    %v1338 = vsel %vm249, %v1337, %v1320
    %v1339 = vrot.slane %v1320, 4
    %v1340 = vsel %vm249, %v1332, %v1339
    %v1341 = vrot.slane %v1336, 4
    %v1342 = vsel %vm249, %v1341, %v1324
    %v1343 = vrot.slane %v1324, 4
    %v1344 = vsel %vm249, %v1336, %v1343
    %v1345 = vsel %vm249, %v1175, %v1156
    %v1347 = vunpack.c.l.s4 1983009808
    %v1348 = vunpack.c.0.s8 %v1347
    %v1349 = vperm.slane %v1345, %v1348
    %v1350 = vrot.slane %v1176, 4
    %v1351 = vsel %vm249, %v1350, %v1174
    %v1353 = vunpack.c.l.s4 1983009808
    %v1354 = vunpack.c.0.s8 %v1353
    %v1355 = vperm.slane %v1351, %v1354
    %v1356 = vsel %vm249, %v1179, %v1168
    %v1358 = vunpack.c.l.s4 1983009808
    %v1359 = vunpack.c.0.s8 %v1358
    %v1360 = vperm.slane %v1356, %v1359
    %v1361 = vrot.slane %v1180, 4
    %v1362 = vsel %vm249, %v1361, %v1178
    %v1364 = vunpack.c.l.s4 1983009808
    %v1365 = vunpack.c.0.s8 %v1364
    %v1366 = vperm.slane %v1362, %v1365
    %v1367 = vrot.slane %v1355, 4
    %v1368 = vsel %vm249, %v1367, %v1349
    %v1369 = vrot.slane %v1349, 4
    %v1370 = vsel %vm249, %v1355, %v1369
    %v1372 = vunpack.c.l.s4 1934713408
    %v1373 = vunpack.c.0.s8 %v1372
    %v1374 = vperm.slane %v1368, %v1373
    %v1376 = vunpack.c.l.s4 1934713408
    %v1377 = vunpack.c.0.s8 %v1376
    %v1378 = vperm.slane %v1370, %v1377
    %v1379 = vrot.slane %v1366, 4
    %v1380 = vsel %vm249, %v1379, %v1360
    %v1381 = vrot.slane %v1360, 4
    %v1382 = vsel %vm249, %v1366, %v1381
    %v1384 = vunpack.c.l.s4 1934713408
    %v1385 = vunpack.c.0.s8 %v1384
    %v1386 = vperm.slane %v1380, %v1385
    %v1388 = vunpack.c.l.s4 1934713408
    %v1389 = vunpack.c.0.s8 %v1388
    %v1390 = vperm.slane %v1382, %v1389
    %v1391 = vrot.slane %v1386, 4
    %v1392 = vsel %vm249, %v1391, %v1374
    %v1393 = vrot.slane %v1374, 4
    %v1394 = vsel %vm249, %v1386, %v1393
    %v1395 = vrot.slane %v1390, 4
    %v1396 = vsel %vm249, %v1395, %v1378
    %v1397 = vrot.slane %v1378, 4
    %v1398 = vsel %vm249, %v1390, %v1397
    %v1399 = vsel %vm249, %v1231, %v1212
    %v1401 = vunpack.c.l.s4 1983009808
    %v1402 = vunpack.c.0.s8 %v1401
    %v1403 = vperm.slane %v1399, %v1402
    %v1404 = vrot.slane %v1232, 4
    %v1405 = vsel %vm249, %v1404, %v1230
    %v1407 = vunpack.c.l.s4 1983009808
    %v1408 = vunpack.c.0.s8 %v1407
    %v1409 = vperm.slane %v1405, %v1408
    %v1410 = vsel %vm249, %v1235, %v1224
    %v1412 = vunpack.c.l.s4 1983009808
    %v1413 = vunpack.c.0.s8 %v1412
    %v1414 = vperm.slane %v1410, %v1413
    %v1415 = vrot.slane %v1236, 4
    %v1416 = vsel %vm249, %v1415, %v1234
    %v1418 = vunpack.c.l.s4 1983009808
    %v1419 = vunpack.c.0.s8 %v1418
    %v1420 = vperm.slane %v1416, %v1419
    %v1421 = vrot.slane %v1409, 4
    %v1422 = vsel %vm249, %v1421, %v1403
    %v1423 = vrot.slane %v1403, 4
    %v1424 = vsel %vm249, %v1409, %v1423
    %v1426 = vunpack.c.l.s4 1934713408
    %v1427 = vunpack.c.0.s8 %v1426
    %v1428 = vperm.slane %v1422, %v1427
    %v1430 = vunpack.c.l.s4 1934713408
    %v1431 = vunpack.c.0.s8 %v1430
    %v1432 = vperm.slane %v1424, %v1431
    %v1433 = vrot.slane %v1420, 4
    %v1434 = vsel %vm249, %v1433, %v1414
    %v1435 = vrot.slane %v1414, 4
    %v1436 = vsel %vm249, %v1420, %v1435
    %v1438 = vunpack.c.l.s4 1934713408
    %v1439 = vunpack.c.0.s8 %v1438
    %v1440 = vperm.slane %v1434, %v1439
    %v1442 = vunpack.c.l.s4 1934713408
    %v1443 = vunpack.c.0.s8 %v1442
    %v1444 = vperm.slane %v1436, %v1443
    %v1445 = vrot.slane %v1440, 4
    %v1446 = vsel %vm249, %v1445, %v1428
    %v1447 = vrot.slane %v1428, 4
    %v1448 = vsel %vm249, %v1440, %v1447
    %v1449 = vrot.slane %v1444, 4
    %v1450 = vsel %vm249, %v1449, %v1432
    %v1451 = vrot.slane %v1432, 4
    %v1452 = vsel %vm249, %v1444, %v1451
    %v1453 = vpack.c.bf16 %v1284, %v1284
    %v1454 = vpack.c.bf16 %v1338, %v1338
    %v1455 = vpack.c.bf16 %v1286, %v1286
    %v1456 = vpack.c.bf16 %v1340, %v1340
    %v1457 = vpack.c.bf16 %v1288, %v1288
    %v1458 = vpack.c.bf16 %v1342, %v1342
    %v1459 = vpack.c.bf16 %v1290, %v1290
    %v1460 = vpack.c.bf16 %v1344, %v1344
    %v1461 = vpack.c.bf16 %v1392, %v1392
    %v1462 = vpack.c.bf16 %v1446, %v1446
    %v1463 = vpack.c.bf16 %v1394, %v1394
    %v1464 = vpack.c.bf16 %v1448, %v1448
    %v1465 = vpack.c.bf16 %v1396, %v1396
    %v1466 = vpack.c.bf16 %v1450, %v1450
    %v1467 = vpack.c.bf16 %v1398, %v1398
    %v1468 = vpack.c.bf16 %v1452, %v1452
    %v1471 = vunpack.c.l.b16 %v957
    %v1472 = vunpack.c.l.b16 %v958
    %v1473 = vpack.c.b16 %v1472, %v1471
    %vm1474 = vcmask 64512
    %v1476 = vsel %vm1474, %v469, 0
    %v1479 = vsel %vm1474, %v1473, 0
    %1481 = vmatpush.bf16.xpose.msra.mxu0 0
    %1482 = vmatpush.bf16.xpose.msra.mxu0 0
    %1483 = vmatpush.bf16.xpose.msra.mxu0 0
    %1484 = vmatpush.bf16.xpose.msra.mxu0 0
    %1485 = vmatpush.bf16.xpose.msra.mxu0 0
    %1486 = vmatpush.bf16.xpose.msra.mxu0 0
    %1487 = vmatpush.bf16.xpose.msra.mxu0 0
    %1488 = vmatpush.bf16.xpose.msra.mxu0 %v1479
    %1489 = vmatmul.bf16.gmra.mxu0 %v1476
    %v1490 = vpop.f32.mrf.mxu0
    %v1491 = vadd.f32 0.0, %v1490
    %v1492 = vpop.f32.mrf.mxu0
    %1493 = vdwg.mxu0
    %v1496 = vunpack.c.l.b16 %v959
    %v1497 = vunpack.c.l.b16 %v960
    %v1498 = vpack.c.b16 %v1497, %v1496
    %v1500 = vsel %vm1474, %v470, 0
    %v1503 = vsel %vm1474, %v1498, 0
    %1505 = vmatpush.bf16.xpose.msra.mxu0 0
    %1506 = vmatpush.bf16.xpose.msra.mxu0 0
    %1507 = vmatpush.bf16.xpose.msra.mxu0 0
    %1508 = vmatpush.bf16.xpose.msra.mxu0 0
    %1509 = vmatpush.bf16.xpose.msra.mxu0 0
    %1510 = vmatpush.bf16.xpose.msra.mxu0 0
    %1511 = vmatpush.bf16.xpose.msra.mxu0 0
    %1512 = vmatpush.bf16.xpose.msra.mxu0 %v1503
    %1513 = vmatmul.bf16.gmra.mxu0 %v1500
    %v1514 = vpop.f32.mrf.mxu0
    %v1515 = vadd.f32 0.0, %v1514
    %v1516 = vpop.f32.mrf.mxu0
    %1517 = vdwg.mxu0
    %v1520 = vunpack.c.l.b16 %v961
    %v1521 = vunpack.c.l.b16 %v962
    %v1522 = vpack.c.b16 %v1521, %v1520
    %v1524 = vsel %vm1474, %v471, 0
    %v1527 = vsel %vm1474, %v1522, 0
    %1529 = vmatpush.bf16.xpose.msra.mxu0 0
    %1530 = vmatpush.bf16.xpose.msra.mxu0 0
    %1531 = vmatpush.bf16.xpose.msra.mxu0 0
    %1532 = vmatpush.bf16.xpose.msra.mxu0 0
    %1533 = vmatpush.bf16.xpose.msra.mxu0 0
    %1534 = vmatpush.bf16.xpose.msra.mxu0 0
    %1535 = vmatpush.bf16.xpose.msra.mxu0 0
    %1536 = vmatpush.bf16.xpose.msra.mxu0 %v1527
    %1537 = vmatmul.bf16.gmra.mxu0 %v1524
    %v1538 = vpop.f32.mrf.mxu0
    %v1539 = vadd.f32 0.0, %v1538
    %v1540 = vpop.f32.mrf.mxu0
    %1541 = vdwg.mxu0
    %v1544 = vunpack.c.l.b16 %v963
    %v1545 = vunpack.c.l.b16 %v964
    %v1546 = vpack.c.b16 %v1545, %v1544
    %v1548 = vsel %vm1474, %v472, 0
    %v1551 = vsel %vm1474, %v1546, 0
    %1553 = vmatpush.bf16.xpose.msra.mxu0 0
    %1554 = vmatpush.bf16.xpose.msra.mxu0 0
    %1555 = vmatpush.bf16.xpose.msra.mxu0 0
    %1556 = vmatpush.bf16.xpose.msra.mxu0 0
    %1557 = vmatpush.bf16.xpose.msra.mxu0 0
    %1558 = vmatpush.bf16.xpose.msra.mxu0 0
    %1559 = vmatpush.bf16.xpose.msra.mxu0 0
    %1560 = vmatpush.bf16.xpose.msra.mxu0 %v1551
    %1561 = vmatmul.bf16.gmra.mxu0 %v1548
    %v1562 = vpop.f32.mrf.mxu0
    %v1563 = vadd.f32 0.0, %v1562
    %v1564 = vpop.f32.mrf.mxu0
    %1565 = vdwg.mxu0
    %v1568 = vunpack.c.l.b16 %v965
    %v1569 = vunpack.c.l.b16 %v966
    %v1570 = vpack.c.b16 %v1569, %v1568
    %v1572 = vsel %vm1474, %v473, 0
    %v1575 = vsel %vm1474, %v1570, 0
    %1577 = vmatpush.bf16.xpose.msra.mxu0 0
    %1578 = vmatpush.bf16.xpose.msra.mxu0 0
    %1579 = vmatpush.bf16.xpose.msra.mxu0 0
    %1580 = vmatpush.bf16.xpose.msra.mxu0 0
    %1581 = vmatpush.bf16.xpose.msra.mxu0 0
    %1582 = vmatpush.bf16.xpose.msra.mxu0 0
    %1583 = vmatpush.bf16.xpose.msra.mxu0 0
    %1584 = vmatpush.bf16.xpose.msra.mxu0 %v1575
    %1585 = vmatmul.bf16.gmra.mxu0 %v1572
    %v1586 = vpop.f32.mrf.mxu0
    %v1587 = vadd.f32 0.0, %v1586
    %v1588 = vpop.f32.mrf.mxu0
    %1589 = vdwg.mxu0
    %v1592 = vunpack.c.l.b16 %v967
    %v1593 = vunpack.c.l.b16 %v968
    %v1594 = vpack.c.b16 %v1593, %v1592
    %v1596 = vsel %vm1474, %v474, 0
    %v1599 = vsel %vm1474, %v1594, 0
    %1601 = vmatpush.bf16.xpose.msra.mxu0 0
    %1602 = vmatpush.bf16.xpose.msra.mxu0 0
    %1603 = vmatpush.bf16.xpose.msra.mxu0 0
    %1604 = vmatpush.bf16.xpose.msra.mxu0 0
    %1605 = vmatpush.bf16.xpose.msra.mxu0 0
    %1606 = vmatpush.bf16.xpose.msra.mxu0 0
    %1607 = vmatpush.bf16.xpose.msra.mxu0 0
    %1608 = vmatpush.bf16.xpose.msra.mxu0 %v1599
    %1609 = vmatmul.bf16.gmra.mxu0 %v1596
    %v1610 = vpop.f32.mrf.mxu0
    %v1611 = vadd.f32 0.0, %v1610
    %v1612 = vpop.f32.mrf.mxu0
    %1613 = vdwg.mxu0
    %v1616 = vunpack.c.l.b16 %v969
    %v1617 = vunpack.c.l.b16 %v970
    %v1618 = vpack.c.b16 %v1617, %v1616
    %v1620 = vsel %vm1474, %v475, 0
    %v1623 = vsel %vm1474, %v1618, 0
    %1625 = vmatpush.bf16.xpose.msra.mxu0 0
    %1626 = vmatpush.bf16.xpose.msra.mxu0 0
    %1627 = vmatpush.bf16.xpose.msra.mxu0 0
    %1628 = vmatpush.bf16.xpose.msra.mxu0 0
    %1629 = vmatpush.bf16.xpose.msra.mxu0 0
    %1630 = vmatpush.bf16.xpose.msra.mxu0 0
    %1631 = vmatpush.bf16.xpose.msra.mxu0 0
    %1632 = vmatpush.bf16.xpose.msra.mxu0 %v1623
    %1633 = vmatmul.bf16.gmra.mxu0 %v1620
    %v1634 = vpop.f32.mrf.mxu0
    %v1635 = vadd.f32 0.0, %v1634
    %v1636 = vpop.f32.mrf.mxu0
    %1637 = vdwg.mxu0
    %v1640 = vunpack.c.l.b16 %v971
    %v1641 = vunpack.c.l.b16 %v972
    %v1642 = vpack.c.b16 %v1641, %v1640
    %v1644 = vsel %vm1474, %v476, 0
    %v1647 = vsel %vm1474, %v1642, 0
    %1649 = vmatpush.bf16.xpose.msra.mxu0 0
    %1650 = vmatpush.bf16.xpose.msra.mxu0 0
    %1651 = vmatpush.bf16.xpose.msra.mxu0 0
    %1652 = vmatpush.bf16.xpose.msra.mxu0 0
    %1653 = vmatpush.bf16.xpose.msra.mxu0 0
    %1654 = vmatpush.bf16.xpose.msra.mxu0 0
    %1655 = vmatpush.bf16.xpose.msra.mxu0 0
    %1656 = vmatpush.bf16.xpose.msra.mxu0 %v1647
    %1657 = vmatmul.bf16.gmra.mxu0 %v1644
    %v1658 = vpop.f32.mrf.mxu0
    %v1659 = vadd.f32 0.0, %v1658
    %v1660 = vpop.f32.mrf.mxu0
    %1661 = vdwg.mxu0
    %v1662 = vsel %vm173, %v1491, -inf
    %1663 = vmax.xlane.f32.xlu0 %v1662
    %v1664 = vpop.xlane.xlu0 %1663
    %v1665 = vsel %vm173, %v1515, -inf
    %1666 = vmax.xlane.f32.xlu0 %v1665
    %v1667 = vpop.xlane.xlu0 %1666
    %v1668 = vsel %vm173, %v1539, -inf
    %1669 = vmax.xlane.f32.xlu0 %v1668
    %v1670 = vpop.xlane.xlu0 %1669
    %v1671 = vsel %vm173, %v1563, -inf
    %1672 = vmax.xlane.f32.xlu0 %v1671
    %v1673 = vpop.xlane.xlu0 %1672
    %v1674 = vsel %vm173, %v1587, -inf
    %1675 = vmax.xlane.f32.xlu0 %v1674
    %v1676 = vpop.xlane.xlu0 %1675
    %v1677 = vsel %vm173, %v1611, -inf
    %1678 = vmax.xlane.f32.xlu0 %v1677
    %v1679 = vpop.xlane.xlu0 %1678
    %v1680 = vsel %vm173, %v1635, -inf
    %1681 = vmax.xlane.f32.xlu0 %v1680
    %v1682 = vpop.xlane.xlu0 %1681
    %v1683 = vsel %vm173, %v1659, -inf
    %1684 = vmax.xlane.f32.xlu0 %v1683
    %v1685 = vpop.xlane.xlu0 %1684
    %v1686 = vsub.f32 %v1491, %v1664
    %v1687 = vsub.f32 %v1515, %v1667
    %v1688 = vsub.f32 %v1539, %v1670
    %v1689 = vsub.f32 %v1563, %v1673
    %v1690 = vsub.f32 %v1587, %v1676
    %v1691 = vsub.f32 %v1611, %v1679
    %v1692 = vsub.f32 %v1635, %v1682
    %v1693 = vsub.f32 %v1659, %v1685
    %v1694 = vmul.f32 %v1686, 1.442695
    %v1695 = vpow.pop %v1694
    %v1696 = vmul.f32 %v1687, 1.442695
    %v1697 = vpow.pop %v1696
    %v1698 = vmul.f32 %v1688, 1.442695
    %v1699 = vpow.pop %v1698
    %v1700 = vmul.f32 %v1689, 1.442695
    %v1701 = vpow.pop %v1700
    %v1702 = vmul.f32 %v1690, 1.442695
    %v1703 = vpow.pop %v1702
    %v1704 = vmul.f32 %v1691, 1.442695
    %v1705 = vpow.pop %v1704
    %v1706 = vmul.f32 %v1692, 1.442695
    %v1707 = vpow.pop %v1706
    %v1708 = vmul.f32 %v1693, 1.442695
    %v1709 = vpow.pop %v1708
    %v1710 = vsel %vm173, %v1695, 0.0
    %1711 = vadd.xlane.f32.xlu0 %v1710
    %v1712 = vpop.xlane.xlu0 %1711
    %v1713 = vsel %vm173, %v1697, 0.0
    %1714 = vadd.xlane.f32.xlu0 %v1713
    %v1715 = vpop.xlane.xlu0 %1714
    %v1716 = vsel %vm173, %v1699, 0.0
    %1717 = vadd.xlane.f32.xlu0 %v1716
    %v1718 = vpop.xlane.xlu0 %1717
    %v1719 = vsel %vm173, %v1701, 0.0
    %1720 = vadd.xlane.f32.xlu0 %v1719
    %v1721 = vpop.xlane.xlu0 %1720
    %v1722 = vsel %vm173, %v1703, 0.0
    %1723 = vadd.xlane.f32.xlu0 %v1722
    %v1724 = vpop.xlane.xlu0 %1723
    %v1725 = vsel %vm173, %v1705, 0.0
    %1726 = vadd.xlane.f32.xlu0 %v1725
    %v1727 = vpop.xlane.xlu0 %1726
    %v1728 = vsel %vm173, %v1707, 0.0
    %1729 = vadd.xlane.f32.xlu0 %v1728
    %v1730 = vpop.xlane.xlu0 %1729
    %v1731 = vsel %vm173, %v1709, 0.0
    %1732 = vadd.xlane.f32.xlu0 %v1731
    %v1733 = vpop.xlane.xlu0 %1732
    %v1734 = vrcp.pop %v1712
    %v1735 = vrcp.pop %v1715
    %v1736 = vrcp.pop %v1718
    %v1737 = vrcp.pop %v1721
    %v1738 = vrcp.pop %v1724
    %v1739 = vrcp.pop %v1727
    %v1740 = vrcp.pop %v1730
    %v1741 = vrcp.pop %v1733
    %v1742 = vmul.f32 %v1695, %v1734
    %v1743 = vmul.f32 %v1697, %v1735
    %v1744 = vmul.f32 %v1699, %v1736
    %v1745 = vmul.f32 %v1701, %v1737
    %v1746 = vmul.f32 %v1703, %v1738
    %v1747 = vmul.f32 %v1705, %v1739
    %v1748 = vmul.f32 %v1707, %v1740
    %v1749 = vmul.f32 %v1709, %v1741
    %v1750 = vpack.c.bf16 %v1742, %v1742
    %v1751 = vpack.c.bf16 %v1743, %v1743
    %v1752 = vpack.c.bf16 %v1744, %v1744
    %v1753 = vpack.c.bf16 %v1745, %v1745
    %v1754 = vpack.c.bf16 %v1746, %v1746
    %v1755 = vpack.c.bf16 %v1747, %v1747
    %v1756 = vpack.c.bf16 %v1748, %v1748
    %v1757 = vpack.c.bf16 %v1749, %v1749
    %v1760 = vunpack.c.l.b16 %v1453
    %v1761 = vunpack.c.l.b16 %v1454
    %v1762 = vpack.c.b16 %v1761, %v1760
    %v1765 = vsel %vm173, %v1750, 0
    %1767 = vmatpush.bf16.msra.mxu0 0
    %1768 = vmatpush.bf16.msra.mxu0 0
    %1769 = vmatpush.bf16.msra.mxu0 0
    %1770 = vmatpush.bf16.msra.mxu0 0
    %1771 = vmatpush.bf16.msra.mxu0 0
    %1772 = vmatpush.bf16.msra.mxu0 0
    %1773 = vmatpush.bf16.msra.mxu0 0
    %1774 = vmatpush.bf16.msra.mxu0 %v1762
    %1775 = vmatmul.bf16.gmra.mxu0 %v1765
    %v1776 = vpop.f32.mrf.mxu0
    %v1777 = vadd.f32 0.0, %v1776
    %v1778 = vpop.f32.mrf.mxu0
    %1779 = vdwg.mxu0
    %v1782 = vunpack.c.l.b16 %v1455
    %v1783 = vunpack.c.l.b16 %v1456
    %v1784 = vpack.c.b16 %v1783, %v1782
    %v1787 = vsel %vm173, %v1751, 0
    %1789 = vmatpush.bf16.msra.mxu0 0
    %1790 = vmatpush.bf16.msra.mxu0 0
    %1791 = vmatpush.bf16.msra.mxu0 0
    %1792 = vmatpush.bf16.msra.mxu0 0
    %1793 = vmatpush.bf16.msra.mxu0 0
    %1794 = vmatpush.bf16.msra.mxu0 0
    %1795 = vmatpush.bf16.msra.mxu0 0
    %1796 = vmatpush.bf16.msra.mxu0 %v1784
    %1797 = vmatmul.bf16.gmra.mxu0 %v1787
    %v1798 = vpop.f32.mrf.mxu0
    %v1799 = vadd.f32 0.0, %v1798
    %v1800 = vpop.f32.mrf.mxu0
    %1801 = vdwg.mxu0
    %v1804 = vunpack.c.l.b16 %v1457
    %v1805 = vunpack.c.l.b16 %v1458
    %v1806 = vpack.c.b16 %v1805, %v1804
    %v1809 = vsel %vm173, %v1752, 0
    %1811 = vmatpush.bf16.msra.mxu0 0
    %1812 = vmatpush.bf16.msra.mxu0 0
    %1813 = vmatpush.bf16.msra.mxu0 0
    %1814 = vmatpush.bf16.msra.mxu0 0
    %1815 = vmatpush.bf16.msra.mxu0 0
    %1816 = vmatpush.bf16.msra.mxu0 0
    %1817 = vmatpush.bf16.msra.mxu0 0
    %1818 = vmatpush.bf16.msra.mxu0 %v1806
    %1819 = vmatmul.bf16.gmra.mxu0 %v1809
    %v1820 = vpop.f32.mrf.mxu0
    %v1821 = vadd.f32 0.0, %v1820
    %v1822 = vpop.f32.mrf.mxu0
    %1823 = vdwg.mxu0
    %v1826 = vunpack.c.l.b16 %v1459
    %v1827 = vunpack.c.l.b16 %v1460
    %v1828 = vpack.c.b16 %v1827, %v1826
    %v1831 = vsel %vm173, %v1753, 0
    %1833 = vmatpush.bf16.msra.mxu0 0
    %1834 = vmatpush.bf16.msra.mxu0 0
    %1835 = vmatpush.bf16.msra.mxu0 0
    %1836 = vmatpush.bf16.msra.mxu0 0
    %1837 = vmatpush.bf16.msra.mxu0 0
    %1838 = vmatpush.bf16.msra.mxu0 0
    %1839 = vmatpush.bf16.msra.mxu0 0
    %1840 = vmatpush.bf16.msra.mxu0 %v1828
    %1841 = vmatmul.bf16.gmra.mxu0 %v1831
    %v1842 = vpop.f32.mrf.mxu0
    %v1843 = vadd.f32 0.0, %v1842
    %v1844 = vpop.f32.mrf.mxu0
    %1845 = vdwg.mxu0
    %v1848 = vunpack.c.l.b16 %v1461
    %v1849 = vunpack.c.l.b16 %v1462
    %v1850 = vpack.c.b16 %v1849, %v1848
    %v1853 = vsel %vm173, %v1754, 0
    %1855 = vmatpush.bf16.msra.mxu0 0
    %1856 = vmatpush.bf16.msra.mxu0 0
    %1857 = vmatpush.bf16.msra.mxu0 0
    %1858 = vmatpush.bf16.msra.mxu0 0
    %1859 = vmatpush.bf16.msra.mxu0 0
    %1860 = vmatpush.bf16.msra.mxu0 0
    %1861 = vmatpush.bf16.msra.mxu0 0
    %1862 = vmatpush.bf16.msra.mxu0 %v1850
    %1863 = vmatmul.bf16.gmra.mxu0 %v1853
    %v1864 = vpop.f32.mrf.mxu0
    %v1865 = vadd.f32 0.0, %v1864
    %v1866 = vpop.f32.mrf.mxu0
    %1867 = vdwg.mxu0
    %v1870 = vunpack.c.l.b16 %v1463
    %v1871 = vunpack.c.l.b16 %v1464
    %v1872 = vpack.c.b16 %v1871, %v1870
    %v1875 = vsel %vm173, %v1755, 0
    %1877 = vmatpush.bf16.msra.mxu0 0
    %1878 = vmatpush.bf16.msra.mxu0 0
    %1879 = vmatpush.bf16.msra.mxu0 0
    %1880 = vmatpush.bf16.msra.mxu0 0
    %1881 = vmatpush.bf16.msra.mxu0 0
    %1882 = vmatpush.bf16.msra.mxu0 0
    %1883 = vmatpush.bf16.msra.mxu0 0
    %1884 = vmatpush.bf16.msra.mxu0 %v1872
    %1885 = vmatmul.bf16.gmra.mxu0 %v1875
    %v1886 = vpop.f32.mrf.mxu0
    %v1887 = vadd.f32 0.0, %v1886
    %v1888 = vpop.f32.mrf.mxu0
    %1889 = vdwg.mxu0
    %v1892 = vunpack.c.l.b16 %v1465
    %v1893 = vunpack.c.l.b16 %v1466
    %v1894 = vpack.c.b16 %v1893, %v1892
    %v1897 = vsel %vm173, %v1756, 0
    %1899 = vmatpush.bf16.msra.mxu0 0
    %1900 = vmatpush.bf16.msra.mxu0 0
    %1901 = vmatpush.bf16.msra.mxu0 0
    %1902 = vmatpush.bf16.msra.mxu0 0
    %1903 = vmatpush.bf16.msra.mxu0 0
    %1904 = vmatpush.bf16.msra.mxu0 0
    %1905 = vmatpush.bf16.msra.mxu0 0
    %1906 = vmatpush.bf16.msra.mxu0 %v1894
    %1907 = vmatmul.bf16.gmra.mxu0 %v1897
    %v1908 = vpop.f32.mrf.mxu0
    %v1909 = vadd.f32 0.0, %v1908
    %v1910 = vpop.f32.mrf.mxu0
    %1911 = vdwg.mxu0
    %v1914 = vunpack.c.l.b16 %v1467
    %v1915 = vunpack.c.l.b16 %v1468
    %v1916 = vpack.c.b16 %v1915, %v1914
    %v1919 = vsel %vm173, %v1757, 0
    %1921 = vmatpush.bf16.msra.mxu0 0
    %1922 = vmatpush.bf16.msra.mxu0 0
    %1923 = vmatpush.bf16.msra.mxu0 0
    %1924 = vmatpush.bf16.msra.mxu0 0
    %1925 = vmatpush.bf16.msra.mxu0 0
    %1926 = vmatpush.bf16.msra.mxu0 0
    %1927 = vmatpush.bf16.msra.mxu0 0
    %1928 = vmatpush.bf16.msra.mxu0 %v1916
    %1929 = vmatmul.bf16.gmra.mxu0 %v1919
    %v1930 = vpop.f32.mrf.mxu0
    %v1931 = vadd.f32 0.0, %v1930
    %v1932 = vpop.f32.mrf.mxu0
    %1933 = vdwg.mxu0
    %v1934 = vrot.slane %v1821, 4
    %v1935 = vsel %vm249, %v1934, %v1777
    %v1936 = vrot.slane %v1777, 4
    %v1937 = vsel %vm249, %v1821, %v1936
    %v1939 = vunpack.c.l.s4 1983009808
    %v1940 = vunpack.c.0.s8 %v1939
    %v1941 = vperm.slane %v1935, %v1940
    %v1943 = vunpack.c.l.s4 1983009808
    %v1944 = vunpack.c.0.s8 %v1943
    %v1945 = vperm.slane %v1937, %v1944
    %v1946 = vrot.slane %v1843, 4
    %v1947 = vsel %vm249, %v1946, %v1799
    %v1948 = vrot.slane %v1799, 4
    %v1949 = vsel %vm249, %v1843, %v1948
    %v1951 = vunpack.c.l.s4 1983009808
    %v1952 = vunpack.c.0.s8 %v1951
    %v1953 = vperm.slane %v1947, %v1952
    %v1955 = vunpack.c.l.s4 1983009808
    %v1956 = vunpack.c.0.s8 %v1955
    %v1957 = vperm.slane %v1949, %v1956
    %v1958 = vrot.slane %v1953, 4
    %v1959 = vsel %vm249, %v1958, %v1941
    %v1960 = vrot.slane %v1941, 4
    %v1961 = vsel %vm249, %v1953, %v1960
    %v1963 = vunpack.c.l.s4 1934713408
    %v1964 = vunpack.c.0.s8 %v1963
    %v1965 = vperm.slane %v1959, %v1964
    %v1967 = vunpack.c.l.s4 1934713408
    %v1968 = vunpack.c.0.s8 %v1967
    %v1969 = vperm.slane %v1961, %v1968
    %v1970 = vrot.slane %v1957, 4
    %v1971 = vsel %vm249, %v1970, %v1945
    %v1972 = vrot.slane %v1945, 4
    %v1973 = vsel %vm249, %v1957, %v1972
    %v1975 = vunpack.c.l.s4 1934713408
    %v1976 = vunpack.c.0.s8 %v1975
    %v1977 = vperm.slane %v1971, %v1976
    %v1979 = vunpack.c.l.s4 1934713408
    %v1980 = vunpack.c.0.s8 %v1979
    %v1981 = vperm.slane %v1973, %v1980
    %v1982 = vrot.slane %v1965, 4
    %v1983 = vsel %vm249, 0.0, %v1982
    %v1984 = vrot.slane %v1969, 4
    %v1985 = vsel %vm249, 0.0, %v1984
    %v1986 = vrot.slane %v1977, 4
    %v1987 = vsel %vm249, 0.0, %v1986
    %v1988 = vrot.slane %v1981, 4
    %v1989 = vsel %vm249, 0.0, %v1988
    %v1990 = vrot.slane %v1909, 4
    %v1991 = vsel %vm249, %v1990, %v1865
    %v1992 = vrot.slane %v1865, 4
    %v1993 = vsel %vm249, %v1909, %v1992
    %v1995 = vunpack.c.l.s4 1983009808
    %v1996 = vunpack.c.0.s8 %v1995
    %v1997 = vperm.slane %v1991, %v1996
    %v1999 = vunpack.c.l.s4 1983009808
    %v2000 = vunpack.c.0.s8 %v1999
    %v2001 = vperm.slane %v1993, %v2000
    %v2002 = vrot.slane %v1931, 4
    %v2003 = vsel %vm249, %v2002, %v1887
    %v2004 = vrot.slane %v1887, 4
    %v2005 = vsel %vm249, %v1931, %v2004
    %v2007 = vunpack.c.l.s4 1983009808
    %v2008 = vunpack.c.0.s8 %v2007
    %v2009 = vperm.slane %v2003, %v2008
    %v2011 = vunpack.c.l.s4 1983009808
    %v2012 = vunpack.c.0.s8 %v2011
    %v2013 = vperm.slane %v2005, %v2012
    %v2014 = vrot.slane %v2009, 4
    %v2015 = vsel %vm249, %v2014, %v1997
    %v2016 = vrot.slane %v1997, 4
    %v2017 = vsel %vm249, %v2009, %v2016
    %v2019 = vunpack.c.l.s4 1934713408
    %v2020 = vunpack.c.0.s8 %v2019
    %v2021 = vperm.slane %v2015, %v2020
    %v2023 = vunpack.c.l.s4 1934713408
    %v2024 = vunpack.c.0.s8 %v2023
    %v2025 = vperm.slane %v2017, %v2024
    %v2026 = vrot.slane %v2013, 4
    %v2027 = vsel %vm249, %v2026, %v2001
    %v2028 = vrot.slane %v2001, 4
    %v2029 = vsel %vm249, %v2013, %v2028
    %v2031 = vunpack.c.l.s4 1934713408
    %v2032 = vunpack.c.0.s8 %v2031
    %v2033 = vperm.slane %v2027, %v2032
    %v2035 = vunpack.c.l.s4 1934713408
    %v2036 = vunpack.c.0.s8 %v2035
    %v2037 = vperm.slane %v2029, %v2036
    %v2038 = vrot.slane %v2021, 4
    %v2039 = vsel %vm249, 0.0, %v2038
    %v2040 = vrot.slane %v2025, 4
    %v2041 = vsel %vm249, 0.0, %v2040
    %v2042 = vrot.slane %v2033, 4
    %v2043 = vsel %vm249, 0.0, %v2042
    %v2044 = vrot.slane %v2037, 4
    %v2045 = vsel %vm249, 0.0, %v2044
    %v2046 = vsel %vm249, %v1984, %v1965
    %v2048 = vunpack.c.l.s4 1983009808
    %v2049 = vunpack.c.0.s8 %v2048
    %v2050 = vperm.slane %v2046, %v2049
    %v2051 = vrot.slane %v1985, 4
    %v2052 = vsel %vm249, %v2051, %v1983
    %v2054 = vunpack.c.l.s4 1983009808
    %v2055 = vunpack.c.0.s8 %v2054
    %v2056 = vperm.slane %v2052, %v2055
    %v2057 = vsel %vm249, %v1988, %v1977
    %v2059 = vunpack.c.l.s4 1983009808
    %v2060 = vunpack.c.0.s8 %v2059
    %v2061 = vperm.slane %v2057, %v2060
    %v2062 = vrot.slane %v1989, 4
    %v2063 = vsel %vm249, %v2062, %v1987
    %v2065 = vunpack.c.l.s4 1983009808
    %v2066 = vunpack.c.0.s8 %v2065
    %v2067 = vperm.slane %v2063, %v2066
    %v2068 = vrot.slane %v2056, 4
    %v2069 = vsel %vm249, %v2068, %v2050
    %v2070 = vrot.slane %v2050, 4
    %v2071 = vsel %vm249, %v2056, %v2070
    %v2073 = vunpack.c.l.s4 1934713408
    %v2074 = vunpack.c.0.s8 %v2073
    %v2075 = vperm.slane %v2069, %v2074
    %v2077 = vunpack.c.l.s4 1934713408
    %v2078 = vunpack.c.0.s8 %v2077
    %v2079 = vperm.slane %v2071, %v2078
    %v2080 = vrot.slane %v2067, 4
    %v2081 = vsel %vm249, %v2080, %v2061
    %v2082 = vrot.slane %v2061, 4
    %v2083 = vsel %vm249, %v2067, %v2082
    %v2085 = vunpack.c.l.s4 1934713408
    %v2086 = vunpack.c.0.s8 %v2085
    %v2087 = vperm.slane %v2081, %v2086
    %v2089 = vunpack.c.l.s4 1934713408
    %v2090 = vunpack.c.0.s8 %v2089
    %v2091 = vperm.slane %v2083, %v2090
    %v2092 = vrot.slane %v2087, 4
    %v2093 = vsel %vm249, %v2092, %v2075
    %v2094 = vrot.slane %v2075, 4
    %v2095 = vsel %vm249, %v2087, %v2094
    %v2096 = vrot.slane %v2091, 4
    %v2097 = vsel %vm249, %v2096, %v2079
    %v2098 = vrot.slane %v2079, 4
    %v2099 = vsel %vm249, %v2091, %v2098
    %v2100 = vsel %vm249, %v2040, %v2021
    %v2102 = vunpack.c.l.s4 1983009808
    %v2103 = vunpack.c.0.s8 %v2102
    %v2104 = vperm.slane %v2100, %v2103
    %v2105 = vrot.slane %v2041, 4
    %v2106 = vsel %vm249, %v2105, %v2039
    %v2108 = vunpack.c.l.s4 1983009808
    %v2109 = vunpack.c.0.s8 %v2108
    %v2110 = vperm.slane %v2106, %v2109
    %v2111 = vsel %vm249, %v2044, %v2033
    %v2113 = vunpack.c.l.s4 1983009808
    %v2114 = vunpack.c.0.s8 %v2113
    %v2115 = vperm.slane %v2111, %v2114
    %v2116 = vrot.slane %v2045, 4
    %v2117 = vsel %vm249, %v2116, %v2043
    %v2119 = vunpack.c.l.s4 1983009808
    %v2120 = vunpack.c.0.s8 %v2119
    %v2121 = vperm.slane %v2117, %v2120
    %v2122 = vrot.slane %v2110, 4
    %v2123 = vsel %vm249, %v2122, %v2104
    %v2124 = vrot.slane %v2104, 4
    %v2125 = vsel %vm249, %v2110, %v2124
    %v2127 = vunpack.c.l.s4 1934713408
    %v2128 = vunpack.c.0.s8 %v2127
    %v2129 = vperm.slane %v2123, %v2128
    %v2131 = vunpack.c.l.s4 1934713408
    %v2132 = vunpack.c.0.s8 %v2131
    %v2133 = vperm.slane %v2125, %v2132
    %v2134 = vrot.slane %v2121, 4
    %v2135 = vsel %vm249, %v2134, %v2115
    %v2136 = vrot.slane %v2115, 4
    %v2137 = vsel %vm249, %v2121, %v2136
    %v2139 = vunpack.c.l.s4 1934713408
    %v2140 = vunpack.c.0.s8 %v2139
    %v2141 = vperm.slane %v2135, %v2140
    %v2143 = vunpack.c.l.s4 1934713408
    %v2144 = vunpack.c.0.s8 %v2143
    %v2145 = vperm.slane %v2137, %v2144
    %v2146 = vrot.slane %v2141, 4
    %v2147 = vsel %vm249, %v2146, %v2129
    %v2148 = vrot.slane %v2129, 4
    %v2149 = vsel %vm249, %v2141, %v2148
    %v2150 = vrot.slane %v2145, 4
    %v2151 = vsel %vm249, %v2150, %v2133
    %v2152 = vrot.slane %v2133, 4
    %v2153 = vsel %vm249, %v2145, %v2152
    %2156 = vrot.lane.b32.xlu0 %v2095, 8
    %v2157 = vpop.permute.xlu0 %2156
    %2158 = vrot.lane.b32.xlu0 %v2149, 8
    %v2159 = vpop.permute.xlu0 %2158
    %2164 = vrot.lane.b32.xlu0 %v2097, 16
    %v2165 = vpop.permute.xlu0 %2164
    %2166 = vrot.lane.b32.xlu0 %v2151, 16
    %v2167 = vpop.permute.xlu0 %2166
    %2172 = vrot.lane.b32.xlu0 %v2099, 24
    %v2173 = vpop.permute.xlu0 %2172
    %2174 = vrot.lane.b32.xlu0 %v2153, 24
    %v2175 = vpop.permute.xlu0 %2174
    %v2178 = vsel %vm1474, %v2093, %v2157
    %v2179 = vsel %vm1474, %v2147, %v2159
    %v2180 = vsel %vm173, %v2178, %v2165
    %v2181 = vsel %vm173, %v2179, %v2167
    %vm2182 = vcmask 195584
    %v2183 = vsel %vm2182, %v2180, %v2173
    %v2184 = vsel %vm2182, %v2181, %v2175
    %v2185 = vpack.c.bf16 %v2184, %v2183
    %v2186 = vld [vmem:[#allocation11] sm:$0xf]
    %v2187 = vld [vmem:[#allocation11 + $0x4] sm:$0xf]
    %v2188 = vld [vmem:[#allocation11 + $0x8] sm:$0xf]
    %v2189 = vld [vmem:[#allocation11 + $0xc] sm:$0xf]
    %v2190 = vld [vmem:[%s6] sm:$0x1]
    %v2192 = vperm.slane %v2190, 0
    %v2198 = vunpack.c.l.b16 %v2186
    %v2199 = vunpack.c.l.b16 %v2187
    %v2200 = vunpack.c.l.b16 %v2188
    %v2201 = vunpack.c.l.b16 %v2189
    %v2202 = vpack.c.b16 %v2199, %v2198
    %v2203 = vpack.c.b16 %v2201, %v2200
    %v2207 = vsel %vm147, %v2185, 0
    %2209 = vmatpush.bf16.msra.mxu0 0
    %2210 = vmatpush.bf16.msra.mxu0 0
    %2211 = vmatpush.bf16.msra.mxu0 0
    %2212 = vmatpush.bf16.msra.mxu0 0
    %2213 = vmatpush.bf16.msra.mxu0 0
    %2214 = vmatpush.bf16.msra.mxu0 0
    %2215 = vmatpush.bf16.msra.mxu0 %v2203
    %2216 = vmatpush.bf16.msra.mxu0 %v2202
    %2217 = vmatmul.bf16.gmra.mxu0 %v2207
    %v2218 = vpop.f32.mrf.mxu0
    %v2219 = vadd.f32 %v2192, %v2218
    %v2220 = vpop.f32.mrf.mxu0
    %v2221 = vadd.f32 %v2192, %v2220
    %2222 = vdwg.mxu0
    %2223 = vst.msk [vmem:[#allocation13] sm:$0xff] %vm147, %v2219
    %2224 = vst.msk [vmem:[#allocation13 + $0x8] sm:$0xff] %vm147, %v2221
    // Predicated region
    $region54: #{tpu_custom_call.1} parent=1 // pred_check
      _
    $region55: #{tpu_custom_call.1} parent=1 // pred_check_branch
      %2226 = sbr.rel (0) target = $region57
    $region56: #{tpu_custom_call.1} parent=1 // pred_region
      %2228 = vsyncadd [#allocation4], 0
      %s2229 = sshll.u32 [#allocation13], 4
      %s2230 = int_to_ptr.vmem [resolvable:$true] %s2229
      %s2231 = sshll.u32 %s7, 4
      %s2232 = int_to_ptr.hbm [resolvable:$true] %s2231
      %2237 = dma.vmem_to_hbm [thread:$0]  %s2230, 256, %s2232, [#allocation4], 128, 128, 8
    $region57: #{tpu_custom_call.1} parent=1 // pred_fallthru
      _
    // Predicated region
    $region58: #{tpu_custom_call.1} parent=1 // pred_check
      _
    $region59: #{tpu_custom_call.1} parent=1 // pred_check_branch
      %2239 = sbr.rel (0) target = $region61
    $region60: #{tpu_custom_call.1} parent=1 // pred_region
      %2241 = dma.done [#allocation4], 256
    $region61: #{tpu_custom_call.1} parent=1 // pred_fallthru
      _
    %2242 = vsyncpa [#allocation3], 1
    %2243 = vsyncpa [#allocation6], 1
    %2244 = vsyncpa [#allocation9], 1
    %2245 = vsyncpa [#allocation12], 1
    %2246 = vsyncpa [#allocation4], 1

</llo_original>
